<compile_context>
chip_gen: v5e
topology: v5e:2x2
jax: 0.10.0
libtpu: 0.0.40
codegen_flags: <defaults>
</compile_context>

<pallas_src>
import functools

import jax
import jax.numpy as jnp
from jax import lax
from jax.experimental import pallas as pl
from jax.experimental.pallas import tpu as pltpu

KH = KW = 3  # 3x3 conv, padding=1 ("same")


def _round_up(x, m):
    return (x + m - 1) // m * m


def _convlstm_kernel(x_ref, wt_ref, b_ref, c_ref, h_out_ref, c_out_ref,
                     *, TH, W, hid, Kp):
    """One (batch, row-tile) step of a ConvLSTM cell, channel-major layout.

    x_ref     : (1, TH+2, W, Kp)  bf16  kx-folded, channel-padded conv input
                                        (rows carry a 1-row halo on each side)
    wt_ref    : (3, 4*hid, Kp)    bf16  per-ky folded gate weights, pre-transposed
    b_ref     : (4*hid, 1)        f32   gate bias (column vector)
    c_ref     : (1, hid, TH*W)    f32   previous cell state (channel-major)
    h_out/c_out: (1, hid, TH*W)   f32
    """
    n = TH * W
    fourh = 4 * hid

    # 3x3 conv as 3 deep matmuls on the MXU, computed transposed:
    #   gates_t[m, h*W + w] = sum_ky sum_k wt[ky, m, k] * x[ky + h, w, k]
    acc = jnp.zeros((fourh, n), jnp.float32)
    for ky in range(KH):
        # Leading-dim slice + tile-aligned reshape: no relayout copy.
        lhs = x_ref[0, ky:ky + TH].reshape(n, Kp)              # (n, Kp) bf16
        acc = acc + lax.dot_general(
            wt_ref[ky], lhs,
            dimension_numbers=(((1,), (1,)), ((), ())),        # A @ B^T
            preferred_element_type=jnp.float32)

    gates = acc + b_ref[...]                                   # (4h, n) + (4h, 1)

    # Gate order matches torch.chunk(gates, 4, dim=channel): i, f, o, g.
    # Full-lane-width rows (n is a multiple of 128).
    i_g = jax.nn.sigmoid(gates[0 * hid:1 * hid])
    f_g = jax.nn.sigmoid(gates[1 * hid:2 * hid])
    o_g = jax.nn.sigmoid(gates[2 * hid:3 * hid])
    g_g = jnp.tanh(gates[3 * hid:4 * hid])

    c_prev = c_ref[0]                                          # (hid, n)
    c_new = f_g * c_prev + i_g * g_g
    h_new = o_g * jnp.tanh(c_new)

    h_out_ref[0] = h_new                                       # lane-dense stores
    c_out_ref[0] = c_new


def fold_gate_weight(w_hwio, hidden_size):
    """(3, 3, C, 4*hid) HWIO -> (3, 4*hid, Kp) bf16.

    The kx taps and input channels are folded into the contraction axis K,
    zero-padded to a lane-aligned Kp, and pre-transposed so the kernel's
    dot_general contracts both operands on their last axis (A @ B^T form).
    """
    kh, kw, C, fourh = w_hwio.shape
    Kp = _round_up(kw * C, 128)
    w = w_hwio.reshape(kh, kw * C, fourh)                      # rows = (kx, c)
    w = jnp.pad(w, ((0, 0), (0, Kp - kw * C), (0, 0)))
    return jnp.transpose(w, (0, 2, 1)).astype(jnp.bfloat16)    # (3, 4h, Kp)


@functools.partial(jax.jit, static_argnames=("tile_h",))
def convlstm_cell(error_nchw, r_nchw, c_nchw, wt_folded, bias_col, *, tile_h=None):
    """ConvLSTMCell step.  error/r/c are NCHW float32; returns (h, c) NCHW."""
    B, cin, H, W = error_nchw.shape
    hid = r_nchw.shape[1]
    C = cin + hid
    fourh = 4 * hid
    Kp = wt_folded.shape[-1]
    assert wt_folded.shape == (KH, fourh, Kp)
    assert Kp >= KW * C

    TH = H if tile_h is None else tile_h
    if H % TH != 0:
        raise ValueError("tile_h must divide H")
    if TH != H and (TH * W) % 128 != 0:
        raise ValueError("tile_h * W must be a multiple of 128")
    n_th = H // TH

    # conv input: NCHW -> NHWC, concat channels, zero-pad spatially ("same"),
    # fold the 3 kx taps into the channel axis, pad K to Kp, cast to bf16.
    x = jnp.concatenate([jnp.transpose(error_nchw, (0, 2, 3, 1)),
                         jnp.transpose(r_nchw, (0, 2, 3, 1))], axis=-1)      # (B,H,W,C)
    x = jnp.pad(x, ((0, 0), (1, 1), (1, 1), (0, 0)))                         # (B,H+2,W+2,C)
    x = jnp.concatenate([x[:, :, k:k + W, :] for k in range(KW)], axis=-1)   # (B,H+2,W,3C)
    x = jnp.pad(x, ((0, 0), (0, 0), (0, 0), (0, Kp - KW * C)))
    x = x.astype(jnp.bfloat16)

    # Row tiles with a 1-row halo on each side (cheap: +2 rows per tile).
    if n_th == 1:
        x_tiles = x                                                          # (B, H+2, W, Kp)
    else:
        row_idx = jnp.arange(n_th)[:, None] * TH + jnp.arange(TH + 2)[None, :]
        x_tiles = jnp.take(x, row_idx, axis=1).reshape(B * n_th, TH + 2, W, Kp)

    # Recurrent state stays channel-major: free reshape, no transpose.
    c_flat = c_nchw.reshape(B, hid, H * W)

    kernel = functools.partial(_convlstm_kernel, TH=TH, W=W, hid=hid, Kp=Kp)
    h_flat, c_new_flat = pl.pallas_call(
        kernel,
        out_shape=(
            jax.ShapeDtypeStruct((B, hid, H * W), jnp.float32),
            jax.ShapeDtypeStruct((B, hid, H * W), jnp.float32),
        ),
        grid_spec=pltpu.PrefetchScalarGridSpec(
            num_scalar_prefetch=0,
            grid=(B, n_th),
            in_specs=[
                pl.BlockSpec((1, TH + 2, W, Kp),
                             lambda b, t: (b * n_th + t, 0, 0, 0)),
                pl.BlockSpec((KH, fourh, Kp), lambda b, t: (0, 0, 0)),
                pl.BlockSpec((fourh, 1), lambda b, t: (0, 0)),
                pl.BlockSpec((1, hid, TH * W), lambda b, t: (b, 0, t)),
            ],
            out_specs=[
                pl.BlockSpec((1, hid, TH * W), lambda b, t: (b, 0, t)),
                pl.BlockSpec((1, hid, TH * W), lambda b, t: (b, 0, t)),
            ],
        ),
        compiler_params=pltpu.CompilerParams(
            dimension_semantics=("parallel", "parallel"),
            vmem_limit_bytes=32 * 1024 * 1024),
    )(x_tiles, wt_folded, bias_col, c_flat)

    # Back to NCHW: pure reshape, no transpose.
    return (h_flat.reshape(B, hid, H, W), c_new_flat.reshape(B, hid, H, W))


class PredictionCellPallas:
    """Mirror of precnet_cells.PredictionCell (forward only)."""

    def __init__(self, in_channels, hidden_size, key, tile_h=None):
        self.in_channels_up, self.in_channels_down = in_channels
        self.hidden_size = hidden_size
        self.tile_h = tile_h
        k1, k2, k3, k4 = jax.random.split(key, 4)
        if self.in_channels_up is not None:
            cin = self.in_channels_up + hidden_size
            self.w_up = 0.1 * jax.random.normal(
                k1, (KH, KW, cin, 4 * hidden_size), jnp.float32)
            self.b_up = 0.1 * jax.random.normal(
                k2, (4 * hidden_size, 1), jnp.float32)
            self.wt_up = fold_gate_weight(self.w_up, hidden_size)
        cin = self.in_channels_down + hidden_size
        self.w_down = 0.1 * jax.random.normal(
            k3, (KH, KW, cin, 4 * hidden_size), jnp.float32)
        self.b_down = 0.1 * jax.random.normal(
            k4, (4 * hidden_size, 1), jnp.float32)
        self.wt_down = fold_gate_weight(self.w_down, hidden_size)

    def __call__(self, error, r_state, c_state, up=False):
        # TODO(synk): torch.cuda.is_available() device-movement branch has no
        # Pallas equivalent (device placement is handled by JAX).
        if up:
            return convlstm_cell(error, r_state, c_state, self.wt_up,
                                 self.b_up, tile_h=self.tile_h)
        return convlstm_cell(error, r_state, c_state, self.wt_down,
                             self.b_down, tile_h=self.tile_h)


def _reference_convlstm(error_nchw, r_nchw, c_nchw, weight_hwio, bias_col):
    """Pure-JAX reference.  The conv operands are rounded to bf16 exactly like
    the kernel's MXU operands (accumulation stays f32), so the comparison is
    tight; versus a pure-f32 conv the expected difference is ~1e-2."""
    x = jnp.transpose(error_nchw, (0, 2, 3, 1))
    r = jnp.transpose(r_nchw, (0, 2, 3, 1))
    c = jnp.transpose(c_nchw, (0, 2, 3, 1))
    xr = jnp.concatenate([x, r], axis=-1)
    xr = xr.astype(jnp.bfloat16).astype(jnp.float32)
    w = weight_hwio.astype(jnp.bfloat16).astype(jnp.float32)
    gates = lax.conv_general_dilated(
        xr, w, (1, 1), "SAME",
        dimension_numbers=("NHWC", "HWIO", "NHWC"),
        precision=lax.Precision.HIGHEST) + bias_col[:, 0]
    hid = r.shape[-1]
    i_g = jax.nn.sigmoid(gates[..., 0 * hid:1 * hid])
    f_g = jax.nn.sigmoid(gates[..., 1 * hid:2 * hid])
    o_g = jax.nn.sigmoid(gates[..., 2 * hid:3 * hid])
    g_g = jnp.tanh(gates[..., 3 * hid:4 * hid])
    c_new = f_g * c + i_g * g_g
    h_new = o_g * jnp.tanh(c_new)
    return (jnp.transpose(h_new, (0, 3, 1, 2)),
            jnp.transpose(c_new, (0, 3, 1, 2)))


if __name__ == "__main__":
    key = jax.random.PRNGKey(0)
    k_err, k_r, k_c, k_params = jax.random.split(key, 4)

    B, Cin, H, W, HID = 2, 4, 16, 16, 32
    error = jax.random.normal(k_err, (B, Cin, H, W), jnp.float32)
    r_state = jax.random.normal(k_r, (B, HID, H, W), jnp.float32)
    c_state = jax.random.normal(k_c, (B, HID, H, W), jnp.float32)

    # tile_h=8 -> grid (B, 2) row tiles, 128-lane-wide state blocks.
    cell = PredictionCellPallas(in_channels=(Cin, Cin), hidden_size=HID,
                                key=k_params, tile_h=8)

    # down path (up=False) — the default branch in PredictionCell.forward
    h_d, c_d = cell(error, r_state, c_state, up=False)
    # up path (up=True)
    h_u, c_u = cell(error, r_state, c_state, up=True)
    jax.block_until_ready((h_d, c_d, h_u, c_u))

    assert h_d.shape == (B, HID, H, W) and c_d.shape == (B, HID, H, W)

    h_ref, c_ref = _reference_convlstm(error, r_state, c_state,
                                       cell.w_down, cell.b_down)
    assert jnp.allclose(h_d, h_ref, atol=5e-3, rtol=5e-3), "h (down) mismatch"
    assert jnp.allclose(c_d, c_ref, atol=5e-3, rtol=5e-3), "c (down) mismatch"

    h_ref_u, c_ref_u = _reference_convlstm(error, r_state, c_state,
                                           cell.w_up, cell.b_up)
    assert jnp.allclose(h_u, h_ref_u, atol=5e-3, rtol=5e-3), "h (up) mismatch"
    assert jnp.allclose(c_u, c_ref_u, atol=5e-3, rtol=5e-3), "c (up) mismatch"

    print("KERNEL_OK")
</pallas_src>

<mosaic_0001>
module attributes {stable_mosaic.version = 11 : i64} {
  func.func @_convlstm_kernel(%arg0: i32, %arg1: i32, %arg2: memref<1x10x16x128xbf16, #tpu.memory_space<vmem>>, %arg3: memref<3x128x128xbf16, #tpu.memory_space<vmem>>, %arg4: memref<128x1xf32, #tpu.memory_space<vmem>>, %arg5: memref<1x32x128xf32, #tpu.memory_space<vmem>>, %arg6: memref<1x32x128xf32, #tpu.memory_space<vmem>>, %arg7: memref<1x32x128xf32, #tpu.memory_space<vmem>>) attributes {dimension_semantics = [#tpu.dimension_semantics<parallel>, #tpu.dimension_semantics<parallel>], iteration_bounds = array<i64: 2, 2>, scalar_prefetch = 0 : i64, scratch_operands = 0 : i64, tpu.core_type = #tpu.core_type<tc>, window_params = [{transform_indices = @transform_0, window_bounds = array<i64: 1, 10, 16, 128>}, {pipeline_mode = #tpu.pipeline_mode<synchronous>, transform_indices = @transform_1, window_bounds = array<i64: 3, 128, 128>}, {pipeline_mode = #tpu.pipeline_mode<synchronous>, transform_indices = @transform_2, window_bounds = array<i64: 128, 1>}, {transform_indices = @transform_3, window_bounds = array<i64: 1, 32, 128>}, {transform_indices = @transform_4, window_bounds = array<i64: 1, 32, 128>}, {transform_indices = @transform_5, window_bounds = array<i64: 1, 32, 128>}]} {
    %cst = arith.constant 0.000000e+00 : f32
    %0 = vector.broadcast %cst : f32 to vector<128x128xf32>
    %c0 = arith.constant 0 : index
    %c0_0 = arith.constant 0 : index
    %c0_1 = arith.constant 0 : index
    %c0_2 = arith.constant 0 : index
    %1 = vector.load %arg2[%c0, %c0_0, %c0_1, %c0_2] : memref<1x10x16x128xbf16, #tpu.memory_space<vmem>>, vector<1x8x16x128xbf16>
    %2 = vector.shape_cast %1 : vector<1x8x16x128xbf16> to vector<8x16x128xbf16>
    %3 = vector.shape_cast %2 : vector<8x16x128xbf16> to vector<128x128xbf16>
    %c0_3 = arith.constant 0 : index
    %c0_4 = arith.constant 0 : index
    %c0_5 = arith.constant 0 : index
    %4 = vector.load %arg3[%c0_3, %c0_4, %c0_5] : memref<3x128x128xbf16, #tpu.memory_space<vmem>>, vector<1x128x128xbf16>
    %5 = vector.shape_cast %4 : vector<1x128x128xbf16> to vector<128x128xbf16>
    %cst_6 = arith.constant dense<0.000000e+00> : vector<128x128xf32>
    %6 = tpu.matmul %5, %3, %cst_6 {dimension_numbers = #tpu.dot_dimension_numbers<[1], [1], [0], [0], [0, 0, 1, 0], [], []>} : vector<128x128xbf16>, vector<128x128xbf16>, vector<128x128xf32> -> vector<128x128xf32>
    %7 = arith.addf %0, %6 : vector<128x128xf32>
    %c0_7 = arith.constant 0 : index
    %c1 = arith.constant 1 : index
    %c0_8 = arith.constant 0 : index
    %c0_9 = arith.constant 0 : index
    %8 = vector.load %arg2[%c0_7, %c1, %c0_8, %c0_9] : memref<1x10x16x128xbf16, #tpu.memory_space<vmem>>, vector<1x8x16x128xbf16>
    %9 = vector.shape_cast %8 : vector<1x8x16x128xbf16> to vector<8x16x128xbf16>
    %10 = vector.shape_cast %9 : vector<8x16x128xbf16> to vector<128x128xbf16>
    %c1_10 = arith.constant 1 : index
    %c0_11 = arith.constant 0 : index
    %c0_12 = arith.constant 0 : index
    %11 = vector.load %arg3[%c1_10, %c0_11, %c0_12] : memref<3x128x128xbf16, #tpu.memory_space<vmem>>, vector<1x128x128xbf16>
    %12 = vector.shape_cast %11 : vector<1x128x128xbf16> to vector<128x128xbf16>
    %cst_13 = arith.constant dense<0.000000e+00> : vector<128x128xf32>
    %13 = tpu.matmul %12, %10, %cst_13 {dimension_numbers = #tpu.dot_dimension_numbers<[1], [1], [0], [0], [0, 0, 1, 0], [], []>} : vector<128x128xbf16>, vector<128x128xbf16>, vector<128x128xf32> -> vector<128x128xf32>
    %14 = arith.addf %7, %13 : vector<128x128xf32>
    %c0_14 = arith.constant 0 : index
    %c2 = arith.constant 2 : index
    %c0_15 = arith.constant 0 : index
    %c0_16 = arith.constant 0 : index
    %15 = vector.load %arg2[%c0_14, %c2, %c0_15, %c0_16] : memref<1x10x16x128xbf16, #tpu.memory_space<vmem>>, vector<1x8x16x128xbf16>
    %16 = vector.shape_cast %15 : vector<1x8x16x128xbf16> to vector<8x16x128xbf16>
    %17 = vector.shape_cast %16 : vector<8x16x128xbf16> to vector<128x128xbf16>
    %c2_17 = arith.constant 2 : index
    %c0_18 = arith.constant 0 : index
    %c0_19 = arith.constant 0 : index
    %18 = vector.load %arg3[%c2_17, %c0_18, %c0_19] : memref<3x128x128xbf16, #tpu.memory_space<vmem>>, vector<1x128x128xbf16>
    %19 = vector.shape_cast %18 : vector<1x128x128xbf16> to vector<128x128xbf16>
    %cst_20 = arith.constant dense<0.000000e+00> : vector<128x128xf32>
    %20 = tpu.matmul %19, %17, %cst_20 {dimension_numbers = #tpu.dot_dimension_numbers<[1], [1], [0], [0], [0, 0, 1, 0], [], []>} : vector<128x128xbf16>, vector<128x128xbf16>, vector<128x128xf32> -> vector<128x128xf32>
    %21 = arith.addf %14, %20 : vector<128x128xf32>
    %c0_21 = arith.constant 0 : index
    %c0_22 = arith.constant 0 : index
    %22 = vector.load %arg4[%c0_21, %c0_22] : memref<128x1xf32, #tpu.memory_space<vmem>>, vector<128x1xf32>
    %23 = vector.broadcast %22 : vector<128x1xf32> to vector<128x128xf32>
    %24 = arith.addf %21, %23 : vector<128x128xf32>
    %25 = vector.extract_strided_slice %24 {offsets = [0, 0], sizes = [32, 128], strides = [1, 1]} : vector<128x128xf32> to vector<32x128xf32>
    %26 = arith.negf %25 : vector<32x128xf32>
    %27 = math.exp %26 : vector<32x128xf32>
    %cst_23 = arith.constant 1.000000e+00 : f32
    %28 = vector.broadcast %cst_23 : f32 to vector<32x128xf32>
    %29 = arith.addf %28, %27 : vector<32x128xf32>
    %30 = arith.divf %28, %29 : vector<32x128xf32>
    %31 = vector.extract_strided_slice %24 {offsets = [32, 0], sizes = [32, 128], strides = [1, 1]} : vector<128x128xf32> to vector<32x128xf32>
    %32 = arith.negf %31 : vector<32x128xf32>
    %33 = math.exp %32 : vector<32x128xf32>
    %cst_24 = arith.constant 1.000000e+00 : f32
    %34 = vector.broadcast %cst_24 : f32 to vector<32x128xf32>
    %35 = arith.addf %34, %33 : vector<32x128xf32>
    %36 = arith.divf %34, %35 : vector<32x128xf32>
    %37 = vector.extract_strided_slice %24 {offsets = [64, 0], sizes = [32, 128], strides = [1, 1]} : vector<128x128xf32> to vector<32x128xf32>
    %38 = arith.negf %37 : vector<32x128xf32>
    %39 = math.exp %38 : vector<32x128xf32>
    %cst_25 = arith.constant 1.000000e+00 : f32
    %40 = vector.broadcast %cst_25 : f32 to vector<32x128xf32>
    %41 = arith.addf %40, %39 : vector<32x128xf32>
    %42 = arith.divf %40, %41 : vector<32x128xf32>
    %43 = vector.extract_strided_slice %24 {offsets = [96, 0], sizes = [32, 128], strides = [1, 1]} : vector<128x128xf32> to vector<32x128xf32>
    %44 = math.tanh %43 : vector<32x128xf32>
    %c0_26 = arith.constant 0 : index
    %c0_27 = arith.constant 0 : index
    %c0_28 = arith.constant 0 : index
    %45 = vector.load %arg5[%c0_26, %c0_27, %c0_28] : memref<1x32x128xf32, #tpu.memory_space<vmem>>, vector<1x32x128xf32>
    %46 = vector.shape_cast %45 : vector<1x32x128xf32> to vector<32x128xf32>
    %47 = arith.mulf %36, %46 : vector<32x128xf32>
    %48 = arith.mulf %30, %44 : vector<32x128xf32>
    %49 = arith.addf %47, %48 : vector<32x128xf32>
    %50 = math.tanh %49 : vector<32x128xf32>
    %51 = arith.mulf %42, %50 : vector<32x128xf32>
    %c0_29 = arith.constant 0 : index
    %c0_30 = arith.constant 0 : index
    %c0_31 = arith.constant 0 : index
    %52 = vector.load %arg6[%c0_29, %c0_30, %c0_31] : memref<1x32x128xf32, #tpu.memory_space<vmem>>, vector<1x32x128xf32>
    %53 = vector.shape_cast %52 : vector<1x32x128xf32> to vector<32x128xf32>
    %54 = vector.shape_cast %51 : vector<32x128xf32> to vector<1x32x128xf32>
    tpu.vector_store %arg6[%c0_29, %c0_30, %c0_31], %54 {strides = array<i32>} : memref<1x32x128xf32, #tpu.memory_space<vmem>>, vector<1x32x128xf32>,
    %c0_32 = arith.constant 0 : index
    %c0_33 = arith.constant 0 : index
    %c0_34 = arith.constant 0 : index
    %55 = vector.load %arg7[%c0_32, %c0_33, %c0_34] : memref<1x32x128xf32, #tpu.memory_space<vmem>>, vector<1x32x128xf32>
    %56 = vector.shape_cast %55 : vector<1x32x128xf32> to vector<32x128xf32>
    %57 = vector.shape_cast %49 : vector<32x128xf32> to vector<1x32x128xf32>
    tpu.vector_store %arg7[%c0_32, %c0_33, %c0_34], %57 {strides = array<i32>} : memref<1x32x128xf32, #tpu.memory_space<vmem>>, vector<1x32x128xf32>,
    return
  }
  func.func @transform_0(%arg0: i32, %arg1: i32) -> (i32, i32, i32, i32) {
    %c2_i32 = arith.constant 2 : i32
    %0 = arith.muli %arg0, %c2_i32 : i32
    %1 = arith.addi %0, %arg1 : i32
    %c0_i32 = arith.constant 0 : i32
    %c0_i32_0 = arith.constant 0 : i32
    %c0_i32_1 = arith.constant 0 : i32
    %c0_i32_2 = arith.constant 0 : i32
    return %1, %c0_i32, %c0_i32_0, %c0_i32_1 : i32, i32, i32, i32
  }
  func.func @transform_1(%arg0: i32, %arg1: i32) -> (i32, i32, i32) {
    %c0_i32 = arith.constant 0 : i32
    %c0_i32_0 = arith.constant 0 : i32
    %c0_i32_1 = arith.constant 0 : i32
    %c0_i32_2 = arith.constant 0 : i32
    return %c0_i32, %c0_i32_0, %c0_i32_1 : i32, i32, i32
  }
  func.func @transform_2(%arg0: i32, %arg1: i32) -> (i32, i32) {
    %c0_i32 = arith.constant 0 : i32
    %c0_i32_0 = arith.constant 0 : i32
    %c0_i32_1 = arith.constant 0 : i32
    return %c0_i32, %c0_i32_0 : i32, i32
  }
  func.func @transform_3(%arg0: i32, %arg1: i32) -> (i32, i32, i32) {
    %c0_i32 = arith.constant 0 : i32
    %c0_i32_0 = arith.constant 0 : i32
    return %arg0, %c0_i32, %arg1 : i32, i32, i32
  }
  func.func @transform_4(%arg0: i32, %arg1: i32) -> (i32, i32, i32) {
    %c0_i32 = arith.constant 0 : i32
    %c0_i32_0 = arith.constant 0 : i32
    return %arg0, %c0_i32, %arg1 : i32, i32, i32
  }
  func.func @transform_5(%arg0: i32, %arg1: i32) -> (i32, i32, i32) {
    %c0_i32 = arith.constant 0 : i32
    %c0_i32_0 = arith.constant 0 : i32
    return %arg0, %c0_i32, %arg1 : i32, i32, i32
  }
}

</mosaic_0001>

<llo_original>
// kernel: convlstm_cell.1
$region0: #{convlstm_cell.1}
  #allocation0 [shape = 'u32[]', space=smem, size = 0x4, offset = 0x4, fixed_abs, tag = 'smem constant byte address 0x4 - core index']
  #allocation1 [shape = 'u32[72,128]{1,0:T(1,128)}', space=vmem, size = 0x9000, scoped, tag = 'internal scratch']
  %s0 = inlined_call_operand.vmem [shape: bf16[4,10,16,128], index: 0, kind: input, shape index: {}]
  %s1 = inlined_call_operand.vmem [shape: bf16[3,128,128], index: 1, kind: input, shape index: {}]
  %s2 = inlined_call_operand.vmem [shape: f32[128,1], index: 2, kind: input, shape index: {}]
  %s3 = inlined_call_operand.vmem [shape: f32[2,32,256], index: 3, kind: input, shape index: {}]
  %s4 = inlined_call_operand.vmem [shape: f32[2,32,256], index: 4, kind: output, shape index: {0}]
  %s5 = inlined_call_operand.vmem [shape: f32[2,32,256], index: 5, kind: output, shape index: {1}]
  %6 = xla_tuple %s4, %s5
  %s7 = sld [smem:[#allocation0]]
  $region163: #{convlstm_cell.1} parent=0
    _
  %s9 = ssub.s32 1, %s7
  %s10 = scalar_select 0, %s9, %s7
  $region1: #{convlstm_cell.1} parent=0
    #allocation2 [shape = 'u8[32768]{0}', space=vmem, size = 0x8000, scoped, tag = 'input window, operand 3']
    #allocation3 [shape = 'u8[32768]{0}', space=vmem, size = 0x8000, scoped, tag = 'output window, operand 0']
    #allocation4 [shape = 'u8[32768]{0}', space=vmem, size = 0x8000, scoped, tag = 'output window, operand 1']
    loop: start=0, step=1, limit=6
    $region2: #{convlstm_cell.1} parent=1 // loop_pre_header
      _
    $region3: #{convlstm_cell.1} parent=1 // loop_header
      %s12 = sphi 0, %s16
      %p13 = scmp.ge.s32.totalorder %s12, 6
      %s19 = sphi 0, %s31
      %s20 = sphi 0, %s27
      %s21 = sphi 0, %s19
      %s22 = sphi 0, %s20
      %s23 = sphi 0, %s21
      %s24 = sphi 0, %s22
      %s38 = sphi 0, %s40
      %s41 = sphi 0, %s38
      %s42 = sphi 0, %s41
      %s58 = sphi 0, %s42
      %s62 = sphi 0, %s62
      %s64 = sphi 0, %s62
      %s65 = sphi 0, %s64
      %s79 = sphi 0, %s65
      %s83 = sphi 0, %s83
      %s85 = sphi 0, %s83
      %s86 = sphi 0, %s85
      %s100 = sphi 0, %s86
      %s108 = sphi 0, %s110
      %s111 = sphi 0, %s108
      %s112 = sphi 0, %s111
      %s128 = sphi 0, %s112
      %s136 = sphi 0, %s138
      %s139 = sphi 0, %s136
      %s140 = sphi 0, %s139
      %s156 = sphi 0, %s140
      %s164 = sphi 0, %s166
      %s167 = sphi 0, %s164
      %s168 = sphi 0, %s167
      %s184 = sphi 0, %s168
    $region4: #{convlstm_cell.1} parent=1 // loop_header_branch
      %15 = sbr.rel (%p13) target = $region8
    $region5: #{convlstm_cell.1} parent=1 // loop_body
      %s17 = ssub.s32 %s12, 1
      %s18 = ssub.s32 %s12, 2
      %s25 = sadd.s32 1, %s20
      %p26 = scmp.ge.s32.totalorder %s25, 2
      %s27 = scalar_select %p26, 0, %s25
      %s28 = sadd.s32 1, %s19
      %s29 = scalar_select %p26, %s28, %s19
      %p30 = scmp.ge.s32.totalorder %s29, 2
      %s31 = scalar_select %p30, 0, %s29
      %s32 = smul.u32 %s19, 2
      %s33 = sadd.s32 %s32, %s20
      %s34 = smul.u32 %s31, 2
      %s35 = sadd.s32 %s34, %s27
      %s36 = ssub.s32 %s33, %s35
      %p37 = scmp.eq.s32.totalorder %s36, 0
      %s39 = sadd.s32 %s38, 1
      %s40 = scalar_select %p37, %s38, %s39
      %p43 = pneg %p37
      %p44 = scmp.eq.s32.totalorder %s12, 3
      %p45 = por %p43, %p44
      %p46 = scmp.ne.s32.totalorder %s38, %s41
      %p47 = scmp.eq.s32.totalorder %s12, 0
      %p48 = por %p46, %p47
      %p49 = scmp.ne.s32.totalorder %s38, %s41
      %p50 = scmp.eq.s32.totalorder %s17, 3
      %p51 = por %p49, %p50
      %p52 = scmp.ne.s32.totalorder %s41, %s42
      %p53 = scmp.eq.s32.totalorder %s17, 0
      %p54 = por %p52, %p53
      %p55 = scmp.ne.s32.totalorder %s41, %s42
      %p56 = scmp.eq.s32.totalorder %s18, 3
      %p57 = por %p55, %p56
      %p59 = scmp.ne.s32.totalorder %s42, %s58
      %p60 = scmp.eq.s32.totalorder %s18, 0
      %p61 = por %p59, %p60
      %s63 = sadd.s32 %s62, 1
      %p66 = scmp.eq.s32.totalorder %s12, 3
      %p67 = scmp.ne.s32.totalorder %s62, %s64
      %p68 = scmp.eq.s32.totalorder %s12, 0
      %p69 = por %p67, %p68
      %p70 = scmp.ne.s32.totalorder %s62, %s64
      %p71 = scmp.eq.s32.totalorder %s17, 3
      %p72 = por %p70, %p71
      %p73 = scmp.ne.s32.totalorder %s64, %s65
      %p74 = scmp.eq.s32.totalorder %s17, 0
      %p75 = por %p73, %p74
      %p76 = scmp.ne.s32.totalorder %s64, %s65
      %p77 = scmp.eq.s32.totalorder %s18, 3
      %p78 = por %p76, %p77
      %p80 = scmp.ne.s32.totalorder %s65, %s79
      %p81 = scmp.eq.s32.totalorder %s18, 0
      %p82 = por %p80, %p81
      %s84 = sadd.s32 %s83, 1
      %p87 = scmp.eq.s32.totalorder %s12, 3
      %p88 = scmp.ne.s32.totalorder %s83, %s85
      %p89 = scmp.eq.s32.totalorder %s12, 0
      %p90 = por %p88, %p89
      %p91 = scmp.ne.s32.totalorder %s83, %s85
      %p92 = scmp.eq.s32.totalorder %s17, 3
      %p93 = por %p91, %p92
      %p94 = scmp.ne.s32.totalorder %s85, %s86
      %p95 = scmp.eq.s32.totalorder %s17, 0
      %p96 = por %p94, %p95
      %p97 = scmp.ne.s32.totalorder %s85, %s86
      %p98 = scmp.eq.s32.totalorder %s18, 3
      %p99 = por %p97, %p98
      %p101 = scmp.ne.s32.totalorder %s86, %s100
      %p102 = scmp.eq.s32.totalorder %s18, 0
      %p103 = por %p101, %p102
      %s104 = ssub.s32 %s19, %s31
      %s105 = ssub.s32 %s20, %s27
      %s106 = sor.u32 %s104, %s105
      %p107 = scmp.eq.s32.totalorder %s106, 0
      %s109 = sadd.s32 %s108, 1
      %s110 = scalar_select %p107, %s108, %s109
      %p113 = pneg %p107
      %p114 = scmp.eq.s32.totalorder %s12, 3
      %p115 = por %p113, %p114
      %p116 = scmp.ne.s32.totalorder %s108, %s111
      %p117 = scmp.eq.s32.totalorder %s12, 0
      %p118 = por %p116, %p117
      %p119 = scmp.ne.s32.totalorder %s108, %s111
      %p120 = scmp.eq.s32.totalorder %s17, 3
      %p121 = por %p119, %p120
      %p122 = scmp.ne.s32.totalorder %s111, %s112
      %p123 = scmp.eq.s32.totalorder %s17, 0
      %p124 = por %p122, %p123
      %p125 = scmp.ne.s32.totalorder %s111, %s112
      %p126 = scmp.eq.s32.totalorder %s18, 3
      %p127 = por %p125, %p126
      %p129 = scmp.ne.s32.totalorder %s112, %s128
      %p130 = scmp.eq.s32.totalorder %s18, 0
      %p131 = por %p129, %p130
      %s132 = ssub.s32 %s19, %s31
      %s133 = ssub.s32 %s20, %s27
      %s134 = sor.u32 %s132, %s133
      %p135 = scmp.eq.s32.totalorder %s134, 0
      %s137 = sadd.s32 %s136, 1
      %s138 = scalar_select %p135, %s136, %s137
      %p141 = pneg %p135
      %p142 = scmp.eq.s32.totalorder %s12, 3
      %p143 = por %p141, %p142
      %p144 = scmp.ne.s32.totalorder %s136, %s139
      %p145 = scmp.eq.s32.totalorder %s12, 0
      %p146 = por %p144, %p145
      %p147 = scmp.ne.s32.totalorder %s136, %s139
      %p148 = scmp.eq.s32.totalorder %s17, 3
      %p149 = por %p147, %p148
      %p150 = scmp.ne.s32.totalorder %s139, %s140
      %p151 = scmp.eq.s32.totalorder %s17, 0
      %p152 = por %p150, %p151
      %p153 = scmp.ne.s32.totalorder %s139, %s140
      %p154 = scmp.eq.s32.totalorder %s18, 3
      %p155 = por %p153, %p154
      %p157 = scmp.ne.s32.totalorder %s140, %s156
      %p158 = scmp.eq.s32.totalorder %s18, 0
      %p159 = por %p157, %p158
      %s160 = ssub.s32 %s19, %s31
      %s161 = ssub.s32 %s20, %s27
      %s162 = sor.u32 %s160, %s161
      %p163 = scmp.eq.s32.totalorder %s162, 0
      %s165 = sadd.s32 %s164, 1
      %s166 = scalar_select %p163, %s164, %s165
      %p169 = pneg %p163
      %p170 = scmp.eq.s32.totalorder %s12, 3
      %p171 = por %p169, %p170
      %p172 = scmp.ne.s32.totalorder %s164, %s167
      %p173 = scmp.eq.s32.totalorder %s12, 0
      %p174 = por %p172, %p173
      %p175 = scmp.ne.s32.totalorder %s164, %s167
      %p176 = scmp.eq.s32.totalorder %s17, 3
      %p177 = por %p175, %p176
      %p178 = scmp.ne.s32.totalorder %s167, %s168
      %p179 = scmp.eq.s32.totalorder %s17, 0
      %p180 = por %p178, %p179
      %p181 = scmp.ne.s32.totalorder %s167, %s168
      %p182 = scmp.eq.s32.totalorder %s18, 3
      %p183 = por %p181, %p182
      %p185 = scmp.ne.s32.totalorder %s168, %s184
      %p186 = scmp.eq.s32.totalorder %s18, 0
      %p187 = por %p185, %p186
      %p188 = scmp.le.s32.totalorder 1, %s12
      %p189 = scmp.lt.s32.totalorder %s12, 5
      %p190 = pnand %p188, %p189
      %p191 = pneg %p190
      // Predicated region
      $region9: #{convlstm_cell.1} parent=5 // pred_check
        _
      $region10: #{convlstm_cell.1} parent=5 // pred_check_branch
        %193 = sbr.rel (%p190) target = $region12
      $region11: #{convlstm_cell.1} parent=5 // pred_region
        %s194 = ssub.s32 %s12, 1
        // Predicated region
        $region13: #{convlstm_cell.1} parent=11 // pred_check
          %p195 = pneg %p75
        $region14: #{convlstm_cell.1} parent=11 // pred_check_branch
          %197 = sbr.rel (%p195) target = $region16
        $region15: #{convlstm_cell.1} parent=11 // pred_region
          _
        $region16: #{convlstm_cell.1} parent=11 // pred_fallthru
          _
        // Predicated region
        $region17: #{convlstm_cell.1} parent=11 // pred_check
          %p198 = pneg %p96
        $region18: #{convlstm_cell.1} parent=11 // pred_check_branch
          %200 = sbr.rel (%p198) target = $region20
        $region19: #{convlstm_cell.1} parent=11 // pred_region
          _
        $region20: #{convlstm_cell.1} parent=11 // pred_fallthru
          _
      $region12: #{convlstm_cell.1} parent=5 // pred_fallthru
        _
      %p201 = scmp.lt.s32.totalorder %s12, 4
      // Predicated region
      $region21: #{convlstm_cell.1} parent=5 // pred_check
        %p202 = pneg %p201
      $region22: #{convlstm_cell.1} parent=5 // pred_check_branch
        %204 = sbr.rel (%p202) target = $region24
      $region23: #{convlstm_cell.1} parent=5 // pred_region
        // Predicated region
        $region25: #{convlstm_cell.1} parent=23 // pred_check
          %p205 = pneg %p48
        $region26: #{convlstm_cell.1} parent=23 // pred_check_branch
          %207 = sbr.rel (%p205) target = $region28
        $region27: #{convlstm_cell.1} parent=23 // pred_region
          %s208 = smul.u32 %s19, 2
          %s209 = sadd.s32 %s208, %s20
          %p210 = scmp.lt.s32.totalorder %s209, 3
          %s211 = scalar_select %p210, %s209, 3
          %s212 = smul.addr %s211, 20
          %s213 = smul.addr %s212, 4
          %s214 = scalar_lea.vmem %s0, %s213
          %s215 = smul.u32 %s19, 2
          %s216 = sadd.s32 %s215, %s20
        $region28: #{convlstm_cell.1} parent=23 // pred_fallthru
          _
        // Predicated region
        $region29: #{convlstm_cell.1} parent=23 // pred_check
          %p217 = pneg %p118
        $region30: #{convlstm_cell.1} parent=23 // pred_check_branch
          %219 = sbr.rel (%p217) target = $region32
        $region31: #{convlstm_cell.1} parent=23 // pred_region
          %s220 = sand.u32 %s108, 1
          %s221 = sand.u32 %s108, 1
          %s222 = smul.addr %s221, 32
          %s223 = scalar_lea.vmem [#allocation2], %s222
          %s224 = smul.addr %s19, 8
          %s225 = sadd.s32 %s20, %s224
          %s226 = smul.addr %s225, 8
          %s227 = scalar_lea.vmem %s3, %s226
          // Predicated region
          $region33: #{convlstm_cell.1} parent=31 // pred_check
            _
          $region34: #{convlstm_cell.1} parent=31 // pred_check_branch
            %229 = sbr.rel (0) target = $region36
          $region35: #{convlstm_cell.1} parent=31 // pred_region
            // Predicated region
            $region37: #{convlstm_cell.1} parent=35 // pred_check
              _
            $region38: #{convlstm_cell.1} parent=35 // pred_check_branch
              %231 = sbr.rel (0) target = $region40
            $region39: #{convlstm_cell.1} parent=35 // pred_region
              // Predicated region
              $region52: #{convlstm_cell.1} parent=39 // pred_check
                _
              $region53: #{convlstm_cell.1} parent=39 // pred_check_branch
                %253 = sbr.rel (0) target = $region55
              $region54: #{convlstm_cell.1} parent=39 // pred_region
                loop: start=0, step=1, limit=1
                $region56: #{convlstm_cell.1} parent=54 // loop_pre_header
                  _
                $region57: #{convlstm_cell.1} parent=54 // loop_header
                  %s255 = sphi 0, %s259
                  %p256 = scmp.ge.s32.totalorder %s255, 1
                  %s260 = sphi %s227, %s227
                  %s261 = sphi %s223, %s223
                $region58: #{convlstm_cell.1} parent=54 // loop_header_branch
                  %258 = sbr.rel (%p256) target = $region62
                $region59: #{convlstm_cell.1} parent=54 // loop_body
                  %v262 = vld [vmem:[%s260] sm:$0xff]
                  %263 = vst [vmem:[%s261] sm:$0xff] %v262
                  %v264 = vld [vmem:[%s260 + $0x10] sm:$0xff]
                  %265 = vst [vmem:[%s261 + $0x8] sm:$0xff] %v264
                  %v266 = vld [vmem:[%s260 + $0x20] sm:$0xff]
                  %267 = vst [vmem:[%s261 + $0x10] sm:$0xff] %v266
                  %v268 = vld [vmem:[%s260 + $0x30] sm:$0xff]
                  %269 = vst [vmem:[%s261 + $0x18] sm:$0xff] %v268
                $region60: #{convlstm_cell.1} parent=54 // loop_footer
                  %s259 = sadd.s32 1, %s255
                $region61: #{convlstm_cell.1} parent=54 // loop_footer_branch
                  %254 = sbr.rel target = $region57
                $region62: #{convlstm_cell.1} parent=54 // loop_exit
                  _
              $region55: #{convlstm_cell.1} parent=39 // pred_fallthru
                _
              // Predicated region
              $region63: #{convlstm_cell.1} parent=39 // pred_check
                _
              $region64: #{convlstm_cell.1} parent=39 // pred_check_branch
                %271 = sbr.rel target = $region66
              $region65: #{convlstm_cell.1} parent=39 // pred_region
                _
              $region66: #{convlstm_cell.1} parent=39 // pred_fallthru
                _
            $region40: #{convlstm_cell.1} parent=35 // pred_fallthru
              _
            // Predicated region
            $region41: #{convlstm_cell.1} parent=35 // pred_check
              _
            $region42: #{convlstm_cell.1} parent=35 // pred_check_branch
              %233 = sbr.rel target = $region44
            $region43: #{convlstm_cell.1} parent=35 // pred_region
              %s235 = ssub.s32 256, 1
              loop: start=0, step=1, limit=1
              $region45: #{convlstm_cell.1} parent=43 // loop_pre_header
                _
              $region46: #{convlstm_cell.1} parent=43 // loop_header
                %s237 = sphi 0, %s241
                %p238 = scmp.ge.s32.totalorder %s237, 1
                %s242 = sphi %s227, %s227
                %s243 = sphi %s223, %s223
              $region47: #{convlstm_cell.1} parent=43 // loop_header_branch
                %240 = sbr.rel (%p238) target = $region51
              $region48: #{convlstm_cell.1} parent=43 // loop_body
                %v244 = vld [vmem:[%s242] sm:%s235]
                %245 = vst [vmem:[%s243] sm:%s235] %v244
                %v246 = vld [vmem:[%s242 + $0x10] sm:%s235]
                %247 = vst [vmem:[%s243 + $0x8] sm:%s235] %v246
                %v248 = vld [vmem:[%s242 + $0x20] sm:%s235]
                %249 = vst [vmem:[%s243 + $0x10] sm:%s235] %v248
                %v250 = vld [vmem:[%s242 + $0x30] sm:%s235]
                %251 = vst [vmem:[%s243 + $0x18] sm:%s235] %v250
              $region49: #{convlstm_cell.1} parent=43 // loop_footer
                %s241 = sadd.s32 1, %s237
              $region50: #{convlstm_cell.1} parent=43 // loop_footer_branch
                %236 = sbr.rel target = $region46
              $region51: #{convlstm_cell.1} parent=43 // loop_exit
                _
            $region44: #{convlstm_cell.1} parent=35 // pred_fallthru
              _
          $region36: #{convlstm_cell.1} parent=31 // pred_fallthru
            _
          %272 = vnop
        $region32: #{convlstm_cell.1} parent=23 // pred_fallthru
          _
      $region24: #{convlstm_cell.1} parent=5 // pred_fallthru
        _
      %p273 = scmp.le.s32.totalorder 1, %s12
      %p274 = scmp.lt.s32.totalorder %s12, 5
      %p275 = pnand %p273, %p274
      %p276 = pneg %p275
      // Predicated region
      $region67: #{convlstm_cell.1} parent=5 // pred_check
        _
      $region68: #{convlstm_cell.1} parent=5 // pred_check_branch
        %278 = sbr.rel (%p275) target = $region70
      $region69: #{convlstm_cell.1} parent=5 // pred_region
        %s279 = ssub.s32 %s12, 1
        %s280 = sand.u32 %s111, 1
        %s281 = sand.u32 %s111, 1
        %s282 = smul.addr %s281, 32
        %s283 = scalar_lea.vmem [#allocation2], %s282
        // Predicated region
        $region71: #{convlstm_cell.1} parent=69 // pred_check
          %p284 = pneg %p124
        $region72: #{convlstm_cell.1} parent=69 // pred_check_branch
          %286 = sbr.rel (%p284) target = $region74
        $region73: #{convlstm_cell.1} parent=69 // pred_region
          _
        $region74: #{convlstm_cell.1} parent=69 // pred_fallthru
          _
        %s287 = smul.u32 %s21, 2
        %s288 = sadd.s32 %s287, %s22
        %p289 = scmp.lt.s32.totalorder %s288, 3
        %s290 = scalar_select %p289, %s288, 3
        %s291 = smul.addr %s290, 20
        %s292 = smul.addr %s291, 4
        %s293 = scalar_lea.vmem %s0, %s292
        %p294 = pneg %p54
        %p295 = pneg %p51
        %p296 = pneg %p75
        %p297 = pneg %p72
        %p298 = pneg %p96
        %p299 = pneg %p93
        %s300 = sand.u32 %s111, 1
        %s301 = sand.u32 %s111, 1
        %s302 = smul.addr %s301, 32
        %s303 = scalar_lea.vmem [#allocation2], %s302
        %p304 = pneg %p124
        %p305 = pneg %p121
        %p306 = pneg %p152
        %p307 = pneg %p149
        %s308 = sand.u32 %s139, 1
        %s309 = sand.u32 %s139, 1
        %s310 = smul.addr %s309, 32
        %s311 = scalar_lea.vmem [#allocation3], %s310
        %p312 = pneg %p180
        %p313 = pneg %p177
        %s314 = sand.u32 %s167, 1
        %s315 = sand.u32 %s167, 1
        %s316 = smul.addr %s315, 32
        %s317 = scalar_lea.vmem [#allocation4], %s316
        %s318 = smul.u32 %s21, 2
        %s319 = sadd.s32 %s318, %s22
        %p320 = scmp.lt.s32.totalorder %s319, 3
        %s321 = scalar_select %p320, %s319, 3
        %s322 = smul.addr %s321, 20
        %s323 = smul.addr %s322, 4
        %s324 = scalar_lea.vmem %s0, %s323
        %s325 = smul.u32 %s21, 2
        %s326 = sadd.s32 %s325, %s22
        %v327 = vld [vmem:[%s324] sm:$0xf]
        %v328 = vld [vmem:[%s324 + $0x4] sm:$0xf]
        %v329 = vld [vmem:[%s324 + $0x8] sm:$0xf]
        %v330 = vld [vmem:[%s324 + $0xc] sm:$0xf]
        %v331 = vld [vmem:[%s324 + $0x10] sm:$0xf]
        %v332 = vld [vmem:[%s324 + $0x14] sm:$0xf]
        %v333 = vld [vmem:[%s324 + $0x18] sm:$0xf]
        %v334 = vld [vmem:[%s324 + $0x1c] sm:$0xf]
        %v335 = vld [vmem:[%s324 + $0x20] sm:$0xf]
        %v336 = vld [vmem:[%s324 + $0x24] sm:$0xf]
        %v337 = vld [vmem:[%s324 + $0x28] sm:$0xf]
        %v338 = vld [vmem:[%s324 + $0x2c] sm:$0xf]
        %v339 = vld [vmem:[%s324 + $0x30] sm:$0xf]
        %v340 = vld [vmem:[%s324 + $0x34] sm:$0xf]
        %v341 = vld [vmem:[%s324 + $0x38] sm:$0xf]
        %v342 = vld [vmem:[%s324 + $0x3c] sm:$0xf]
        %v343 = vld [vmem:[%s1] sm:$0xf]
        %v344 = vld [vmem:[%s1 + $0x4] sm:$0xf]
        %v345 = vld [vmem:[%s1 + $0x8] sm:$0xf]
        %v346 = vld [vmem:[%s1 + $0xc] sm:$0xf]
        %v347 = vld [vmem:[%s1 + $0x10] sm:$0xf]
        %v348 = vld [vmem:[%s1 + $0x14] sm:$0xf]
        %v349 = vld [vmem:[%s1 + $0x18] sm:$0xf]
        %v350 = vld [vmem:[%s1 + $0x1c] sm:$0xf]
        %v351 = vld [vmem:[%s1 + $0x20] sm:$0xf]
        %v352 = vld [vmem:[%s1 + $0x24] sm:$0xf]
        %v353 = vld [vmem:[%s1 + $0x28] sm:$0xf]
        %v354 = vld [vmem:[%s1 + $0x2c] sm:$0xf]
        %v355 = vld [vmem:[%s1 + $0x30] sm:$0xf]
        %v356 = vld [vmem:[%s1 + $0x34] sm:$0xf]
        %v357 = vld [vmem:[%s1 + $0x38] sm:$0xf]
        %v358 = vld [vmem:[%s1 + $0x3c] sm:$0xf]
        %s359 = scalar_lea.vmem %s324, 8
        %v360 = vld [vmem:[%s359] sm:$0xf]
        %v361 = vld [vmem:[%s359 + $0x4] sm:$0xf]
        %v362 = vld [vmem:[%s359 + $0x8] sm:$0xf]
        %v363 = vld [vmem:[%s359 + $0xc] sm:$0xf]
        %v364 = vld [vmem:[%s359 + $0x10] sm:$0xf]
        %v365 = vld [vmem:[%s359 + $0x14] sm:$0xf]
        %v366 = vld [vmem:[%s359 + $0x18] sm:$0xf]
        %v367 = vld [vmem:[%s359 + $0x1c] sm:$0xf]
        %v368 = vld [vmem:[%s359 + $0x20] sm:$0xf]
        %v369 = vld [vmem:[%s359 + $0x24] sm:$0xf]
        %v370 = vld [vmem:[%s359 + $0x28] sm:$0xf]
        %v371 = vld [vmem:[%s359 + $0x2c] sm:$0xf]
        %v372 = vld [vmem:[%s359 + $0x30] sm:$0xf]
        %v373 = vld [vmem:[%s359 + $0x34] sm:$0xf]
        %v374 = vld [vmem:[%s359 + $0x38] sm:$0xf]
        %v375 = vld [vmem:[%s359 + $0x3c] sm:$0xf]
        %s376 = scalar_lea.vmem %s1, 64
        %v377 = vld [vmem:[%s376] sm:$0xf]
        %v378 = vld [vmem:[%s376 + $0x4] sm:$0xf]
        %v379 = vld [vmem:[%s376 + $0x8] sm:$0xf]
        %v380 = vld [vmem:[%s376 + $0xc] sm:$0xf]
        %v381 = vld [vmem:[%s376 + $0x10] sm:$0xf]
        %v382 = vld [vmem:[%s376 + $0x14] sm:$0xf]
        %v383 = vld [vmem:[%s376 + $0x18] sm:$0xf]
        %v384 = vld [vmem:[%s376 + $0x1c] sm:$0xf]
        %v385 = vld [vmem:[%s376 + $0x20] sm:$0xf]
        %v386 = vld [vmem:[%s376 + $0x24] sm:$0xf]
        %v387 = vld [vmem:[%s376 + $0x28] sm:$0xf]
        %v388 = vld [vmem:[%s376 + $0x2c] sm:$0xf]
        %v389 = vld [vmem:[%s376 + $0x30] sm:$0xf]
        %v390 = vld [vmem:[%s376 + $0x34] sm:$0xf]
        %v391 = vld [vmem:[%s376 + $0x38] sm:$0xf]
        %v392 = vld [vmem:[%s376 + $0x3c] sm:$0xf]
        %v409 = vunpack.c.l.b16 %v377
        %v410 = vunpack.c.l.b16 %v378
        %v411 = vunpack.c.l.b16 %v379
        %v412 = vunpack.c.l.b16 %v380
        %v413 = vunpack.c.l.b16 %v381
        %v414 = vunpack.c.l.b16 %v382
        %v415 = vunpack.c.l.b16 %v383
        %v416 = vunpack.c.l.b16 %v384
        %v417 = vunpack.c.l.b16 %v385
        %v418 = vunpack.c.l.b16 %v386
        %v419 = vunpack.c.l.b16 %v387
        %v420 = vunpack.c.l.b16 %v388
        %v421 = vunpack.c.l.b16 %v389
        %v422 = vunpack.c.l.b16 %v390
        %v423 = vunpack.c.l.b16 %v391
        %v424 = vunpack.c.l.b16 %v392
        %v425 = vpack.c.b16 %v410, %v409
        %v426 = vpack.c.b16 %v412, %v411
        %v427 = vpack.c.b16 %v414, %v413
        %v428 = vpack.c.b16 %v416, %v415
        %v429 = vpack.c.b16 %v418, %v417
        %v430 = vpack.c.b16 %v420, %v419
        %v431 = vpack.c.b16 %v422, %v421
        %v432 = vpack.c.b16 %v424, %v423
        %v457 = vunpack.c.l.b16 %v360
        %v458 = vunpack.c.l.b16 %v361
        %v459 = vunpack.c.l.b16 %v362
        %v460 = vunpack.c.l.b16 %v363
        %v461 = vunpack.c.l.b16 %v364
        %v462 = vunpack.c.l.b16 %v365
        %v463 = vunpack.c.l.b16 %v366
        %v464 = vunpack.c.l.b16 %v367
        %v465 = vunpack.c.l.b16 %v368
        %v466 = vunpack.c.l.b16 %v369
        %v467 = vunpack.c.l.b16 %v370
        %v468 = vunpack.c.l.b16 %v371
        %v469 = vunpack.c.l.b16 %v372
        %v470 = vunpack.c.l.b16 %v373
        %v471 = vunpack.c.l.b16 %v374
        %v472 = vunpack.c.l.b16 %v375
        %v473 = vpack.c.b16 %v458, %v457
        %v474 = vpack.c.b16 %v460, %v459
        %v475 = vpack.c.b16 %v462, %v461
        %v476 = vpack.c.b16 %v464, %v463
        %v477 = vpack.c.b16 %v466, %v465
        %v478 = vpack.c.b16 %v468, %v467
        %v479 = vpack.c.b16 %v470, %v469
        %v480 = vpack.c.b16 %v472, %v471
        %489 = vmatpush.bf16.xpose.msra.mxu0 %v480
        %490 = vmatpush.bf16.xpose.msra.mxu0 %v479
        %491 = vmatpush.bf16.xpose.msra.mxu0 %v478
        %492 = vmatpush.bf16.xpose.msra.mxu0 %v477
        %493 = vmatpush.bf16.xpose.msra.mxu0 %v476
        %494 = vmatpush.bf16.xpose.msra.mxu0 %v475
        %495 = vmatpush.bf16.xpose.msra.mxu0 %v474
        %496 = vmatpush.bf16.xpose.msra.mxu0 %v473
        %497 = vmatmul.bf16.gmra.mxu0 %v425
        %v498 = vpop.f32.mrf.mxu0
        %v499 = vadd.f32 0.0, %v498
        %v500 = vpop.f32.mrf.mxu0
        %v501 = vadd.f32 0.0, %v500
        %502 = vmatmul.bf16.gmra.mxu0 %v426
        %v503 = vpop.f32.mrf.mxu0
        %v504 = vadd.f32 0.0, %v503
        %v505 = vpop.f32.mrf.mxu0
        %v506 = vadd.f32 0.0, %v505
        %507 = vmatmul.bf16.gmra.mxu0 %v427
        %v508 = vpop.f32.mrf.mxu0
        %v509 = vadd.f32 0.0, %v508
        %v510 = vpop.f32.mrf.mxu0
        %v511 = vadd.f32 0.0, %v510
        %512 = vmatmul.bf16.gmra.mxu0 %v428
        %v513 = vpop.f32.mrf.mxu0
        %v514 = vadd.f32 0.0, %v513
        %v515 = vpop.f32.mrf.mxu0
        %v516 = vadd.f32 0.0, %v515
        %517 = vmatmul.bf16.gmra.mxu0 %v429
        %v518 = vpop.f32.mrf.mxu0
        %v519 = vadd.f32 0.0, %v518
        %v520 = vpop.f32.mrf.mxu0
        %v521 = vadd.f32 0.0, %v520
        %522 = vmatmul.bf16.gmra.mxu0 %v430
        %v523 = vpop.f32.mrf.mxu0
        %v524 = vadd.f32 0.0, %v523
        %v525 = vpop.f32.mrf.mxu0
        %v526 = vadd.f32 0.0, %v525
        %527 = vmatmul.bf16.gmra.mxu0 %v431
        %v528 = vpop.f32.mrf.mxu0
        %v529 = vadd.f32 0.0, %v528
        %v530 = vpop.f32.mrf.mxu0
        %v531 = vadd.f32 0.0, %v530
        %532 = vmatmul.bf16.gmra.mxu0 %v432
        %v533 = vpop.f32.mrf.mxu0
        %v534 = vadd.f32 0.0, %v533
        %v535 = vpop.f32.mrf.mxu0
        %v536 = vadd.f32 0.0, %v535
        %537 = vdwg.mxu0
        %v554 = vunpack.c.l.b16 %v343
        %v555 = vunpack.c.l.b16 %v344
        %v556 = vunpack.c.l.b16 %v345
        %v557 = vunpack.c.l.b16 %v346
        %v558 = vunpack.c.l.b16 %v347
        %v559 = vunpack.c.l.b16 %v348
        %v560 = vunpack.c.l.b16 %v349
        %v561 = vunpack.c.l.b16 %v350
        %v562 = vunpack.c.l.b16 %v351
        %v563 = vunpack.c.l.b16 %v352
        %v564 = vunpack.c.l.b16 %v353
        %v565 = vunpack.c.l.b16 %v354
        %v566 = vunpack.c.l.b16 %v355
        %v567 = vunpack.c.l.b16 %v356
        %v568 = vunpack.c.l.b16 %v357
        %v569 = vunpack.c.l.b16 %v358
        %v570 = vpack.c.b16 %v555, %v554
        %v571 = vpack.c.b16 %v557, %v556
        %v572 = vpack.c.b16 %v559, %v558
        %v573 = vpack.c.b16 %v561, %v560
        %v574 = vpack.c.b16 %v563, %v562
        %v575 = vpack.c.b16 %v565, %v564
        %v576 = vpack.c.b16 %v567, %v566
        %v577 = vpack.c.b16 %v569, %v568
        %v602 = vunpack.c.l.b16 %v327
        %v603 = vunpack.c.l.b16 %v328
        %v604 = vunpack.c.l.b16 %v329
        %v605 = vunpack.c.l.b16 %v330
        %v606 = vunpack.c.l.b16 %v331
        %v607 = vunpack.c.l.b16 %v332
        %v608 = vunpack.c.l.b16 %v333
        %v609 = vunpack.c.l.b16 %v334
        %v610 = vunpack.c.l.b16 %v335
        %v611 = vunpack.c.l.b16 %v336
        %v612 = vunpack.c.l.b16 %v337
        %v613 = vunpack.c.l.b16 %v338
        %v614 = vunpack.c.l.b16 %v339
        %v615 = vunpack.c.l.b16 %v340
        %v616 = vunpack.c.l.b16 %v341
        %v617 = vunpack.c.l.b16 %v342
        %v618 = vpack.c.b16 %v603, %v602
        %v619 = vpack.c.b16 %v605, %v604
        %v620 = vpack.c.b16 %v607, %v606
        %v621 = vpack.c.b16 %v609, %v608
        %v622 = vpack.c.b16 %v611, %v610
        %v623 = vpack.c.b16 %v613, %v612
        %v624 = vpack.c.b16 %v615, %v614
        %v625 = vpack.c.b16 %v617, %v616
        %634 = vmatpush.bf16.xpose.msra.mxu0 %v625
        %635 = vmatpush.bf16.xpose.msra.mxu0 %v624
        %636 = vmatpush.bf16.xpose.msra.mxu0 %v623
        %637 = vmatpush.bf16.xpose.msra.mxu0 %v622
        %638 = vmatpush.bf16.xpose.msra.mxu0 %v621
        %639 = vmatpush.bf16.xpose.msra.mxu0 %v620
        %640 = vmatpush.bf16.xpose.msra.mxu0 %v619
        %641 = vmatpush.bf16.xpose.msra.mxu0 %v618
        %642 = vmatmul.bf16.gmra.mxu0 %v570
        %v643 = vpop.f32.mrf.mxu0
        %v644 = vadd.f32 %v499, %v643
        %v645 = vpop.f32.mrf.mxu0
        %v646 = vadd.f32 %v501, %v645
        %647 = vmatmul.bf16.gmra.mxu0 %v571
        %v648 = vpop.f32.mrf.mxu0
        %v649 = vadd.f32 %v504, %v648
        %v650 = vpop.f32.mrf.mxu0
        %v651 = vadd.f32 %v506, %v650
        %652 = vmatmul.bf16.gmra.mxu0 %v572
        %v653 = vpop.f32.mrf.mxu0
        %v654 = vadd.f32 %v509, %v653
        %v655 = vpop.f32.mrf.mxu0
        %v656 = vadd.f32 %v511, %v655
        %657 = vmatmul.bf16.gmra.mxu0 %v573
        %v658 = vpop.f32.mrf.mxu0
        %v659 = vadd.f32 %v514, %v658
        %v660 = vpop.f32.mrf.mxu0
        %v661 = vadd.f32 %v516, %v660
        %662 = vmatmul.bf16.gmra.mxu0 %v574
        %v663 = vpop.f32.mrf.mxu0
        %v664 = vadd.f32 %v519, %v663
        %v665 = vpop.f32.mrf.mxu0
        %v666 = vadd.f32 %v521, %v665
        %667 = vmatmul.bf16.gmra.mxu0 %v575
        %v668 = vpop.f32.mrf.mxu0
        %v669 = vadd.f32 %v524, %v668
        %v670 = vpop.f32.mrf.mxu0
        %v671 = vadd.f32 %v526, %v670
        %672 = vmatmul.bf16.gmra.mxu0 %v576
        %v673 = vpop.f32.mrf.mxu0
        %v674 = vadd.f32 %v529, %v673
        %v675 = vpop.f32.mrf.mxu0
        %v676 = vadd.f32 %v531, %v675
        %677 = vmatmul.bf16.gmra.mxu0 %v577
        %v678 = vpop.f32.mrf.mxu0
        %v679 = vadd.f32 %v534, %v678
        %v680 = vpop.f32.mrf.mxu0
        %v681 = vadd.f32 %v536, %v680
        %682 = vdwg.mxu0
        %s683 = scalar_lea.vmem %s324, 16
        %v684 = vld [vmem:[%s683] sm:$0xf]
        %v685 = vld [vmem:[%s683 + $0x4] sm:$0xf]
        %v686 = vld [vmem:[%s683 + $0x8] sm:$0xf]
        %v687 = vld [vmem:[%s683 + $0xc] sm:$0xf]
        %v688 = vld [vmem:[%s683 + $0x10] sm:$0xf]
        %v689 = vld [vmem:[%s683 + $0x14] sm:$0xf]
        %v690 = vld [vmem:[%s683 + $0x18] sm:$0xf]
        %v691 = vld [vmem:[%s683 + $0x1c] sm:$0xf]
        %v692 = vld [vmem:[%s683 + $0x20] sm:$0xf]
        %v693 = vld [vmem:[%s683 + $0x24] sm:$0xf]
        %v694 = vld [vmem:[%s683 + $0x28] sm:$0xf]
        %v695 = vld [vmem:[%s683 + $0x2c] sm:$0xf]
        %v696 = vld [vmem:[%s683 + $0x30] sm:$0xf]
        %v697 = vld [vmem:[%s683 + $0x34] sm:$0xf]
        %v698 = vld [vmem:[%s683 + $0x38] sm:$0xf]
        %v699 = vld [vmem:[%s683 + $0x3c] sm:$0xf]
        %s700 = scalar_lea.vmem %s1, 128
        %v701 = vld [vmem:[%s700] sm:$0xf]
        %v702 = vld [vmem:[%s700 + $0x4] sm:$0xf]
        %v703 = vld [vmem:[%s700 + $0x8] sm:$0xf]
        %v704 = vld [vmem:[%s700 + $0xc] sm:$0xf]
        %v705 = vld [vmem:[%s700 + $0x10] sm:$0xf]
        %v706 = vld [vmem:[%s700 + $0x14] sm:$0xf]
        %v707 = vld [vmem:[%s700 + $0x18] sm:$0xf]
        %v708 = vld [vmem:[%s700 + $0x1c] sm:$0xf]
        %v709 = vld [vmem:[%s700 + $0x20] sm:$0xf]
        %v710 = vld [vmem:[%s700 + $0x24] sm:$0xf]
        %v711 = vld [vmem:[%s700 + $0x28] sm:$0xf]
        %v712 = vld [vmem:[%s700 + $0x2c] sm:$0xf]
        %v713 = vld [vmem:[%s700 + $0x30] sm:$0xf]
        %v714 = vld [vmem:[%s700 + $0x34] sm:$0xf]
        %v715 = vld [vmem:[%s700 + $0x38] sm:$0xf]
        %v716 = vld [vmem:[%s700 + $0x3c] sm:$0xf]
        %v733 = vunpack.c.l.b16 %v701
        %v734 = vunpack.c.l.b16 %v702
        %v735 = vunpack.c.l.b16 %v703
        %v736 = vunpack.c.l.b16 %v704
        %v737 = vunpack.c.l.b16 %v705
        %v738 = vunpack.c.l.b16 %v706
        %v739 = vunpack.c.l.b16 %v707
        %v740 = vunpack.c.l.b16 %v708
        %v741 = vunpack.c.l.b16 %v709
        %v742 = vunpack.c.l.b16 %v710
        %v743 = vunpack.c.l.b16 %v711
        %v744 = vunpack.c.l.b16 %v712
        %v745 = vunpack.c.l.b16 %v713
        %v746 = vunpack.c.l.b16 %v714
        %v747 = vunpack.c.l.b16 %v715
        %v748 = vunpack.c.l.b16 %v716
        %v749 = vpack.c.b16 %v734, %v733
        %v750 = vpack.c.b16 %v736, %v735
        %v751 = vpack.c.b16 %v738, %v737
        %v752 = vpack.c.b16 %v740, %v739
        %v753 = vpack.c.b16 %v742, %v741
        %v754 = vpack.c.b16 %v744, %v743
        %v755 = vpack.c.b16 %v746, %v745
        %v756 = vpack.c.b16 %v748, %v747
        %v781 = vunpack.c.l.b16 %v684
        %v782 = vunpack.c.l.b16 %v685
        %v783 = vunpack.c.l.b16 %v686
        %v784 = vunpack.c.l.b16 %v687
        %v785 = vunpack.c.l.b16 %v688
        %v786 = vunpack.c.l.b16 %v689
        %v787 = vunpack.c.l.b16 %v690
        %v788 = vunpack.c.l.b16 %v691
        %v789 = vunpack.c.l.b16 %v692
        %v790 = vunpack.c.l.b16 %v693
        %v791 = vunpack.c.l.b16 %v694
        %v792 = vunpack.c.l.b16 %v695
        %v793 = vunpack.c.l.b16 %v696
        %v794 = vunpack.c.l.b16 %v697
        %v795 = vunpack.c.l.b16 %v698
        %v796 = vunpack.c.l.b16 %v699
        %v797 = vpack.c.b16 %v782, %v781
        %v798 = vpack.c.b16 %v784, %v783
        %v799 = vpack.c.b16 %v786, %v785
        %v800 = vpack.c.b16 %v788, %v787
        %v801 = vpack.c.b16 %v790, %v789
        %v802 = vpack.c.b16 %v792, %v791
        %v803 = vpack.c.b16 %v794, %v793
        %v804 = vpack.c.b16 %v796, %v795
        %813 = vmatpush.bf16.xpose.msra.mxu0 %v804
        %814 = vmatpush.bf16.xpose.msra.mxu0 %v803
        %815 = vmatpush.bf16.xpose.msra.mxu0 %v802
        %816 = vmatpush.bf16.xpose.msra.mxu0 %v801
        %817 = vmatpush.bf16.xpose.msra.mxu0 %v800
        %818 = vmatpush.bf16.xpose.msra.mxu0 %v799
        %819 = vmatpush.bf16.xpose.msra.mxu0 %v798
        %820 = vmatpush.bf16.xpose.msra.mxu0 %v797
        %821 = vmatmul.bf16.gmra.mxu0 %v749
        %v822 = vpop.f32.mrf.mxu0
        %v823 = vadd.f32 0.0, %v822
        %v824 = vpop.f32.mrf.mxu0
        %v825 = vadd.f32 0.0, %v824
        %826 = vmatmul.bf16.gmra.mxu0 %v750
        %v827 = vpop.f32.mrf.mxu0
        %v828 = vadd.f32 0.0, %v827
        %v829 = vpop.f32.mrf.mxu0
        %v830 = vadd.f32 0.0, %v829
        %831 = vmatmul.bf16.gmra.mxu0 %v751
        %v832 = vpop.f32.mrf.mxu0
        %v833 = vadd.f32 0.0, %v832
        %v834 = vpop.f32.mrf.mxu0
        %v835 = vadd.f32 0.0, %v834
        %836 = vmatmul.bf16.gmra.mxu0 %v752
        %v837 = vpop.f32.mrf.mxu0
        %v838 = vadd.f32 0.0, %v837
        %v839 = vpop.f32.mrf.mxu0
        %v840 = vadd.f32 0.0, %v839
        %841 = vmatmul.bf16.gmra.mxu0 %v753
        %v842 = vpop.f32.mrf.mxu0
        %v843 = vadd.f32 0.0, %v842
        %v844 = vpop.f32.mrf.mxu0
        %v845 = vadd.f32 0.0, %v844
        %846 = vmatmul.bf16.gmra.mxu0 %v754
        %v847 = vpop.f32.mrf.mxu0
        %v848 = vadd.f32 0.0, %v847
        %v849 = vpop.f32.mrf.mxu0
        %v850 = vadd.f32 0.0, %v849
        %851 = vmatmul.bf16.gmra.mxu0 %v755
        %v852 = vpop.f32.mrf.mxu0
        %v853 = vadd.f32 0.0, %v852
        %v854 = vpop.f32.mrf.mxu0
        %v855 = vadd.f32 0.0, %v854
        %856 = vmatmul.bf16.gmra.mxu0 %v756
        %v857 = vpop.f32.mrf.mxu0
        %v858 = vadd.f32 0.0, %v857
        %v859 = vpop.f32.mrf.mxu0
        %v860 = vadd.f32 0.0, %v859
        %861 = vdwg.mxu0
        %v862 = vadd.f32 %v644, %v823
        %v863 = vadd.f32 %v646, %v825
        %v864 = vadd.f32 %v649, %v828
        %v865 = vadd.f32 %v651, %v830
        %v866 = vadd.f32 %v654, %v833
        %v867 = vadd.f32 %v656, %v835
        %v868 = vadd.f32 %v659, %v838
        %v869 = vadd.f32 %v661, %v840
        %v870 = vadd.f32 %v664, %v843
        %v871 = vadd.f32 %v666, %v845
        %v872 = vadd.f32 %v669, %v848
        %v873 = vadd.f32 %v671, %v850
        %v874 = vadd.f32 %v674, %v853
        %v875 = vadd.f32 %v676, %v855
        %v876 = vadd.f32 %v679, %v858
        %v877 = vadd.f32 %v681, %v860
        %v878 = vld [vmem:[%s2] sm:$0xff]
        %v879 = vld [vmem:[%s2 + $0x8] sm:$0xff]
        %v880 = vld [vmem:[%s2 + $0x10] sm:$0xff]
        %v881 = vld [vmem:[%s2 + $0x18] sm:$0xff]
        %v882 = vld [vmem:[%s2 + $0x20] sm:$0xff]
        %v883 = vld [vmem:[%s2 + $0x28] sm:$0xff]
        %v884 = vld [vmem:[%s2 + $0x30] sm:$0xff]
        %v885 = vld [vmem:[%s2 + $0x38] sm:$0xff]
        %v886 = vld [vmem:[%s2 + $0x40] sm:$0xff]
        %v887 = vld [vmem:[%s2 + $0x48] sm:$0xff]
        %v888 = vld [vmem:[%s2 + $0x50] sm:$0xff]
        %v889 = vld [vmem:[%s2 + $0x58] sm:$0xff]
        %v890 = vld [vmem:[%s2 + $0x60] sm:$0xff]
        %v891 = vld [vmem:[%s2 + $0x68] sm:$0xff]
        %v892 = vld [vmem:[%s2 + $0x70] sm:$0xff]
        %v893 = vld [vmem:[%s2 + $0x78] sm:$0xff]
        %895 = vset.pattern.permute.xlu0 0
        %896 = vperm.xlu0 %895, %v878
        %v897 = vpop.permute.xlu0 %896
        %900 = vset.pattern.permute.xlu0 0
        %901 = vperm.xlu0 %900, %v879
        %v902 = vpop.permute.xlu0 %901
        %905 = vset.pattern.permute.xlu0 0
        %906 = vperm.xlu0 %905, %v880
        %v907 = vpop.permute.xlu0 %906
        %910 = vset.pattern.permute.xlu0 0
        %911 = vperm.xlu0 %910, %v881
        %v912 = vpop.permute.xlu0 %911
        %915 = vset.pattern.permute.xlu0 0
        %916 = vperm.xlu0 %915, %v882
        %v917 = vpop.permute.xlu0 %916
        %920 = vset.pattern.permute.xlu0 0
        %921 = vperm.xlu0 %920, %v883
        %v922 = vpop.permute.xlu0 %921
        %925 = vset.pattern.permute.xlu0 0
        %926 = vperm.xlu0 %925, %v884
        %v927 = vpop.permute.xlu0 %926
        %930 = vset.pattern.permute.xlu0 0
        %931 = vperm.xlu0 %930, %v885
        %v932 = vpop.permute.xlu0 %931
        %935 = vset.pattern.permute.xlu0 0
        %936 = vperm.xlu0 %935, %v886
        %v937 = vpop.permute.xlu0 %936
        %940 = vset.pattern.permute.xlu0 0
        %941 = vperm.xlu0 %940, %v887
        %v942 = vpop.permute.xlu0 %941
        %945 = vset.pattern.permute.xlu0 0
        %946 = vperm.xlu0 %945, %v888
        %v947 = vpop.permute.xlu0 %946
        %950 = vset.pattern.permute.xlu0 0
        %951 = vperm.xlu0 %950, %v889
        %v952 = vpop.permute.xlu0 %951
        %955 = vset.pattern.permute.xlu0 0
        %956 = vperm.xlu0 %955, %v890
        %v957 = vpop.permute.xlu0 %956
        %960 = vset.pattern.permute.xlu0 0
        %961 = vperm.xlu0 %960, %v891
        %v962 = vpop.permute.xlu0 %961
        %965 = vset.pattern.permute.xlu0 0
        %966 = vperm.xlu0 %965, %v892
        %v967 = vpop.permute.xlu0 %966
        %970 = vset.pattern.permute.xlu0 0
        %971 = vperm.xlu0 %970, %v893
        %v972 = vpop.permute.xlu0 %971
        %v974 = vadd.f32 %v862, %v897
        %v975 = vadd.f32 %v863, %v902
        %v976 = vadd.f32 %v864, %v907
        %v977 = vadd.f32 %v865, %v912
        %v978 = vadd.f32 %v866, %v917
        %v979 = vadd.f32 %v867, %v922
        %v980 = vadd.f32 %v868, %v927
        %v981 = vadd.f32 %v869, %v932
        %v982 = vadd.f32 %v870, %v937
        %v983 = vadd.f32 %v871, %v942
        %v984 = vadd.f32 %v872, %v947
        %v985 = vadd.f32 %v873, %v952
        %v986 = vadd.f32 %v874, %v957
        %v987 = vadd.f32 %v875, %v962
        %v988 = vadd.f32 %v876, %v967
        %v989 = vadd.f32 %v877, %v972
        %v990 = vxor.u32 %v974, 2147483648
        %v991 = vxor.u32 %v975, 2147483648
        %v992 = vxor.u32 %v976, 2147483648
        %v993 = vxor.u32 %v977, 2147483648
        %v994 = vmul.f32 %v990, 1.442695
        %v995 = vpow.pop %v994
        %v996 = vmul.f32 %v991, 1.442695
        %v997 = vpow.pop %v996
        %v998 = vmul.f32 %v992, 1.442695
        %v999 = vpow.pop %v998
        %v1000 = vmul.f32 %v993, 1.442695
        %v1001 = vpow.pop %v1000
        %v1002 = vadd.f32 %v995, 1.0
        %v1003 = vadd.f32 %v997, 1.0
        %v1004 = vadd.f32 %v999, 1.0
        %v1005 = vadd.f32 %v1001, 1.0
        %v1006 = vrcp.pop %v1002
        %v1007 = vmul.f32 %v1002, %v1006
        %v1008 = vsub.f32 1.0, %v1007
        %v1009 = vmul.f32 %v1006, %v1008
        %v1010 = vadd.f32 %v1006, %v1009
        %vm1011 = vweird.f32 %v1002
        %vm1012 = vweird.f32 %v1006
        %vm1013 = vmor %vm1011, %vm1012
        %v1014 = vsel %vm1013, %v1006, %v1010
        %v1015 = vand.u32 2147483647, %v1002
        %vm1016 = vcmp.eq.f32.partialorder %v1015, 8.507059e+37
        %v1017 = vand.u32 %v1002, 2147483648
        %v1018 = vor.u32 1.1754944e-38, %v1017
        %v1019 = vsel %vm1016, %v1018, %v1014
        %v1020 = vmul.f32 1.0, %v1019
        %v1021 = vrcp.pop %v1003
        %v1022 = vmul.f32 %v1003, %v1021
        %v1023 = vsub.f32 1.0, %v1022
        %v1024 = vmul.f32 %v1021, %v1023
        %v1025 = vadd.f32 %v1021, %v1024
        %vm1026 = vweird.f32 %v1003
        %vm1027 = vweird.f32 %v1021
        %vm1028 = vmor %vm1026, %vm1027
        %v1029 = vsel %vm1028, %v1021, %v1025
        %v1030 = vand.u32 2147483647, %v1003
        %vm1031 = vcmp.eq.f32.partialorder %v1030, 8.507059e+37
        %v1032 = vand.u32 %v1003, 2147483648
        %v1033 = vor.u32 1.1754944e-38, %v1032
        %v1034 = vsel %vm1031, %v1033, %v1029
        %v1035 = vmul.f32 1.0, %v1034
        %v1036 = vrcp.pop %v1004
        %v1037 = vmul.f32 %v1004, %v1036
        %v1038 = vsub.f32 1.0, %v1037
        %v1039 = vmul.f32 %v1036, %v1038
        %v1040 = vadd.f32 %v1036, %v1039
        %vm1041 = vweird.f32 %v1004
        %vm1042 = vweird.f32 %v1036
        %vm1043 = vmor %vm1041, %vm1042
        %v1044 = vsel %vm1043, %v1036, %v1040
        %v1045 = vand.u32 2147483647, %v1004
        %vm1046 = vcmp.eq.f32.partialorder %v1045, 8.507059e+37
        %v1047 = vand.u32 %v1004, 2147483648
        %v1048 = vor.u32 1.1754944e-38, %v1047
        %v1049 = vsel %vm1046, %v1048, %v1044
        %v1050 = vmul.f32 1.0, %v1049
        %v1051 = vrcp.pop %v1005
        %v1052 = vmul.f32 %v1005, %v1051
        %v1053 = vsub.f32 1.0, %v1052
        %v1054 = vmul.f32 %v1051, %v1053
        %v1055 = vadd.f32 %v1051, %v1054
        %vm1056 = vweird.f32 %v1005
        %vm1057 = vweird.f32 %v1051
        %vm1058 = vmor %vm1056, %vm1057
        %v1059 = vsel %vm1058, %v1051, %v1055
        %v1060 = vand.u32 2147483647, %v1005
        %vm1061 = vcmp.eq.f32.partialorder %v1060, 8.507059e+37
        %v1062 = vand.u32 %v1005, 2147483648
        %v1063 = vor.u32 1.1754944e-38, %v1062
        %v1064 = vsel %vm1061, %v1063, %v1059
        %v1065 = vmul.f32 1.0, %v1064
        %v1066 = vxor.u32 %v978, 2147483648
        %v1067 = vxor.u32 %v979, 2147483648
        %v1068 = vxor.u32 %v980, 2147483648
        %v1069 = vxor.u32 %v981, 2147483648
        %v1070 = vmul.f32 %v1066, 1.442695
        %v1071 = vpow.pop %v1070
        %v1072 = vmul.f32 %v1067, 1.442695
        %v1073 = vpow.pop %v1072
        %v1074 = vmul.f32 %v1068, 1.442695
        %v1075 = vpow.pop %v1074
        %v1076 = vmul.f32 %v1069, 1.442695
        %v1077 = vpow.pop %v1076
        %v1078 = vadd.f32 %v1071, 1.0
        %v1079 = vadd.f32 %v1073, 1.0
        %v1080 = vadd.f32 %v1075, 1.0
        %v1081 = vadd.f32 %v1077, 1.0
        %v1082 = vrcp.pop %v1078
        %v1083 = vmul.f32 %v1078, %v1082
        %v1084 = vsub.f32 1.0, %v1083
        %v1085 = vmul.f32 %v1082, %v1084
        %v1086 = vadd.f32 %v1082, %v1085
        %vm1087 = vweird.f32 %v1078
        %vm1088 = vweird.f32 %v1082
        %vm1089 = vmor %vm1087, %vm1088
        %v1090 = vsel %vm1089, %v1082, %v1086
        %v1091 = vand.u32 2147483647, %v1078
        %vm1092 = vcmp.eq.f32.partialorder %v1091, 8.507059e+37
        %v1093 = vand.u32 %v1078, 2147483648
        %v1094 = vor.u32 1.1754944e-38, %v1093
        %v1095 = vsel %vm1092, %v1094, %v1090
        %v1096 = vmul.f32 1.0, %v1095
        %v1097 = vrcp.pop %v1079
        %v1098 = vmul.f32 %v1079, %v1097
        %v1099 = vsub.f32 1.0, %v1098
        %v1100 = vmul.f32 %v1097, %v1099
        %v1101 = vadd.f32 %v1097, %v1100
        %vm1102 = vweird.f32 %v1079
        %vm1103 = vweird.f32 %v1097
        %vm1104 = vmor %vm1102, %vm1103
        %v1105 = vsel %vm1104, %v1097, %v1101
        %v1106 = vand.u32 2147483647, %v1079
        %vm1107 = vcmp.eq.f32.partialorder %v1106, 8.507059e+37
        %v1108 = vand.u32 %v1079, 2147483648
        %v1109 = vor.u32 1.1754944e-38, %v1108
        %v1110 = vsel %vm1107, %v1109, %v1105
        %v1111 = vmul.f32 1.0, %v1110
        %v1112 = vrcp.pop %v1080
        %v1113 = vmul.f32 %v1080, %v1112
        %v1114 = vsub.f32 1.0, %v1113
        %v1115 = vmul.f32 %v1112, %v1114
        %v1116 = vadd.f32 %v1112, %v1115
        %vm1117 = vweird.f32 %v1080
        %vm1118 = vweird.f32 %v1112
        %vm1119 = vmor %vm1117, %vm1118
        %v1120 = vsel %vm1119, %v1112, %v1116
        %v1121 = vand.u32 2147483647, %v1080
        %vm1122 = vcmp.eq.f32.partialorder %v1121, 8.507059e+37
        %v1123 = vand.u32 %v1080, 2147483648
        %v1124 = vor.u32 1.1754944e-38, %v1123
        %v1125 = vsel %vm1122, %v1124, %v1120
        %v1126 = vmul.f32 1.0, %v1125
        %v1127 = vrcp.pop %v1081
        %v1128 = vmul.f32 %v1081, %v1127
        %v1129 = vsub.f32 1.0, %v1128
        %v1130 = vmul.f32 %v1127, %v1129
        %v1131 = vadd.f32 %v1127, %v1130
        %vm1132 = vweird.f32 %v1081
        %vm1133 = vweird.f32 %v1127
        %vm1134 = vmor %vm1132, %vm1133
        %v1135 = vsel %vm1134, %v1127, %v1131
        %v1136 = vand.u32 2147483647, %v1081
        %vm1137 = vcmp.eq.f32.partialorder %v1136, 8.507059e+37
        %v1138 = vand.u32 %v1081, 2147483648
        %v1139 = vor.u32 1.1754944e-38, %v1138
        %v1140 = vsel %vm1137, %v1139, %v1135
        %v1141 = vmul.f32 1.0, %v1140
        %v1142 = vxor.u32 %v982, 2147483648
        %v1143 = vxor.u32 %v983, 2147483648
        %v1144 = vxor.u32 %v984, 2147483648
        %v1145 = vxor.u32 %v985, 2147483648
        %v1146 = vmul.f32 %v1142, 1.442695
        %v1147 = vpow.pop %v1146
        %v1148 = vmul.f32 %v1143, 1.442695
        %v1149 = vpow.pop %v1148
        %v1150 = vmul.f32 %v1144, 1.442695
        %v1151 = vpow.pop %v1150
        %v1152 = vmul.f32 %v1145, 1.442695
        %v1153 = vpow.pop %v1152
        %v1154 = vadd.f32 %v1147, 1.0
        %v1155 = vadd.f32 %v1149, 1.0
        %v1156 = vadd.f32 %v1151, 1.0
        %v1157 = vadd.f32 %v1153, 1.0
        %v1158 = vrcp.pop %v1154
        %v1159 = vmul.f32 %v1154, %v1158
        %v1160 = vsub.f32 1.0, %v1159
        %v1161 = vmul.f32 %v1158, %v1160
        %v1162 = vadd.f32 %v1158, %v1161
        %vm1163 = vweird.f32 %v1154
        %vm1164 = vweird.f32 %v1158
        %vm1165 = vmor %vm1163, %vm1164
        %v1166 = vsel %vm1165, %v1158, %v1162
        %v1167 = vand.u32 2147483647, %v1154
        %vm1168 = vcmp.eq.f32.partialorder %v1167, 8.507059e+37
        %v1169 = vand.u32 %v1154, 2147483648
        %v1170 = vor.u32 1.1754944e-38, %v1169
        %v1171 = vsel %vm1168, %v1170, %v1166
        %v1172 = vmul.f32 1.0, %v1171
        %v1173 = vrcp.pop %v1155
        %v1174 = vmul.f32 %v1155, %v1173
        %v1175 = vsub.f32 1.0, %v1174
        %v1176 = vmul.f32 %v1173, %v1175
        %v1177 = vadd.f32 %v1173, %v1176
        %vm1178 = vweird.f32 %v1155
        %vm1179 = vweird.f32 %v1173
        %vm1180 = vmor %vm1178, %vm1179
        %v1181 = vsel %vm1180, %v1173, %v1177
        %v1182 = vand.u32 2147483647, %v1155
        %vm1183 = vcmp.eq.f32.partialorder %v1182, 8.507059e+37
        %v1184 = vand.u32 %v1155, 2147483648
        %v1185 = vor.u32 1.1754944e-38, %v1184
        %v1186 = vsel %vm1183, %v1185, %v1181
        %v1187 = vmul.f32 1.0, %v1186
        %v1188 = vrcp.pop %v1156
        %v1189 = vmul.f32 %v1156, %v1188
        %v1190 = vsub.f32 1.0, %v1189
        %v1191 = vmul.f32 %v1188, %v1190
        %v1192 = vadd.f32 %v1188, %v1191
        %vm1193 = vweird.f32 %v1156
        %vm1194 = vweird.f32 %v1188
        %vm1195 = vmor %vm1193, %vm1194
        %v1196 = vsel %vm1195, %v1188, %v1192
        %v1197 = vand.u32 2147483647, %v1156
        %vm1198 = vcmp.eq.f32.partialorder %v1197, 8.507059e+37
        %v1199 = vand.u32 %v1156, 2147483648
        %v1200 = vor.u32 1.1754944e-38, %v1199
        %v1201 = vsel %vm1198, %v1200, %v1196
        %v1202 = vmul.f32 1.0, %v1201
        %v1203 = vrcp.pop %v1157
        %v1204 = vmul.f32 %v1157, %v1203
        %v1205 = vsub.f32 1.0, %v1204
        %v1206 = vmul.f32 %v1203, %v1205
        %v1207 = vadd.f32 %v1203, %v1206
        %vm1208 = vweird.f32 %v1157
        %vm1209 = vweird.f32 %v1203
        %vm1210 = vmor %vm1208, %vm1209
        %v1211 = vsel %vm1210, %v1203, %v1207
        %v1212 = vand.u32 2147483647, %v1157
        %vm1213 = vcmp.eq.f32.partialorder %v1212, 8.507059e+37
        %v1214 = vand.u32 %v1157, 2147483648
        %v1215 = vor.u32 1.1754944e-38, %v1214
        %v1216 = vsel %vm1213, %v1215, %v1211
        %v1217 = vmul.f32 1.0, %v1216
        %v1218 = vtanh.pop %v986
        %v1219 = vtanh.pop %v987
        %v1220 = vtanh.pop %v988
        %v1221 = vtanh.pop %v989
        %v1222 = vld [vmem:[%s283] sm:$0xff]
        %v1223 = vld [vmem:[%s283 + $0x8] sm:$0xff]
        %v1224 = vld [vmem:[%s283 + $0x10] sm:$0xff]
        %v1225 = vld [vmem:[%s283 + $0x18] sm:$0xff]
        %v1226 = vmul.f32 %v1096, %v1222
        %v1227 = vmul.f32 %v1111, %v1223
        %v1228 = vmul.f32 %v1126, %v1224
        %v1229 = vmul.f32 %v1141, %v1225
        %v1230 = vmul.f32 %v1020, %v1218
        %v1231 = vmul.f32 %v1035, %v1219
        %v1232 = vmul.f32 %v1050, %v1220
        %v1233 = vmul.f32 %v1065, %v1221
        %v1234 = vadd.f32 %v1226, %v1230
        %v1235 = vadd.f32 %v1227, %v1231
        %v1236 = vadd.f32 %v1228, %v1232
        %v1237 = vadd.f32 %v1229, %v1233
        %v1238 = vtanh.pop %v1234
        %v1239 = vtanh.pop %v1235
        %v1240 = vtanh.pop %v1236
        %v1241 = vtanh.pop %v1237
        %v1242 = vmul.f32 %v1172, %v1238
        %v1243 = vmul.f32 %v1187, %v1239
        %v1244 = vmul.f32 %v1202, %v1240
        %v1245 = vmul.f32 %v1217, %v1241
        %1246 = vst [vmem:[%s311] sm:$0xff] %v1242
        %1247 = vst [vmem:[%s311 + $0x8] sm:$0xff] %v1243
        %1248 = vst [vmem:[%s311 + $0x10] sm:$0xff] %v1244
        %1249 = vst [vmem:[%s311 + $0x18] sm:$0xff] %v1245
        %1250 = vst [vmem:[%s317] sm:$0xff] %v1234
        %1251 = vst [vmem:[%s317 + $0x8] sm:$0xff] %v1235
        %1252 = vst [vmem:[%s317 + $0x10] sm:$0xff] %v1236
        %1253 = vst [vmem:[%s317 + $0x18] sm:$0xff] %v1237
        %s1254 = sand.u32 %s139, 1
        %s1255 = sand.u32 %s139, 1
        %s1256 = smul.addr %s1255, 32
        %s1257 = scalar_lea.vmem [#allocation3], %s1256
        %s1258 = sand.u32 %s167, 1
        %s1259 = sand.u32 %s167, 1
        %s1260 = smul.addr %s1259, 32
        %s1261 = scalar_lea.vmem [#allocation4], %s1260
        // Predicated region
        $region75: #{convlstm_cell.1} parent=69 // pred_check
          %p1262 = pneg %p149
        $region76: #{convlstm_cell.1} parent=69 // pred_check_branch
          %1264 = sbr.rel (%p1262) target = $region78
        $region77: #{convlstm_cell.1} parent=69 // pred_region
          %s1265 = smul.addr %s21, 8
          %s1266 = sadd.s32 %s22, %s1265
          %s1267 = smul.addr %s1266, 8
          %s1268 = scalar_lea.vmem %s4, %s1267
          // Predicated region
          $region79: #{convlstm_cell.1} parent=77 // pred_check
            _
          $region80: #{convlstm_cell.1} parent=77 // pred_check_branch
            %1270 = sbr.rel (0) target = $region82
          $region81: #{convlstm_cell.1} parent=77 // pred_region
            // Predicated region
            $region83: #{convlstm_cell.1} parent=81 // pred_check
              _
            $region84: #{convlstm_cell.1} parent=81 // pred_check_branch
              %1272 = sbr.rel (0) target = $region86
            $region85: #{convlstm_cell.1} parent=81 // pred_region
              // Predicated region
              $region98: #{convlstm_cell.1} parent=85 // pred_check
                _
              $region99: #{convlstm_cell.1} parent=85 // pred_check_branch
                %1294 = sbr.rel (0) target = $region101
              $region100: #{convlstm_cell.1} parent=85 // pred_region
                loop: start=0, step=1, limit=1
                $region102: #{convlstm_cell.1} parent=100 // loop_pre_header
                  _
                $region103: #{convlstm_cell.1} parent=100 // loop_header
                  %s1296 = sphi 0, %s1300
                  %p1297 = scmp.ge.s32.totalorder %s1296, 1
                  %s1301 = sphi %s1257, %s1257
                  %s1302 = sphi %s1268, %s1268
                $region104: #{convlstm_cell.1} parent=100 // loop_header_branch
                  %1299 = sbr.rel (%p1297) target = $region108
                $region105: #{convlstm_cell.1} parent=100 // loop_body
                  %v1303 = vld [vmem:[%s1301] sm:$0xff]
                  %1304 = vst [vmem:[%s1302] sm:$0xff] %v1303
                  %v1305 = vld [vmem:[%s1301 + $0x8] sm:$0xff]
                  %1306 = vst [vmem:[%s1302 + $0x10] sm:$0xff] %v1305
                  %v1307 = vld [vmem:[%s1301 + $0x10] sm:$0xff]
                  %1308 = vst [vmem:[%s1302 + $0x20] sm:$0xff] %v1307
                  %v1309 = vld [vmem:[%s1301 + $0x18] sm:$0xff]
                  %1310 = vst [vmem:[%s1302 + $0x30] sm:$0xff] %v1309
                $region106: #{convlstm_cell.1} parent=100 // loop_footer
                  %s1300 = sadd.s32 1, %s1296
                $region107: #{convlstm_cell.1} parent=100 // loop_footer_branch
                  %1295 = sbr.rel target = $region103
                $region108: #{convlstm_cell.1} parent=100 // loop_exit
                  _
              $region101: #{convlstm_cell.1} parent=85 // pred_fallthru
                _
              // Predicated region
              $region109: #{convlstm_cell.1} parent=85 // pred_check
                _
              $region110: #{convlstm_cell.1} parent=85 // pred_check_branch
                %1312 = sbr.rel target = $region112
              $region111: #{convlstm_cell.1} parent=85 // pred_region
                _
              $region112: #{convlstm_cell.1} parent=85 // pred_fallthru
                _
            $region86: #{convlstm_cell.1} parent=81 // pred_fallthru
              _
            // Predicated region
            $region87: #{convlstm_cell.1} parent=81 // pred_check
              _
            $region88: #{convlstm_cell.1} parent=81 // pred_check_branch
              %1274 = sbr.rel target = $region90
            $region89: #{convlstm_cell.1} parent=81 // pred_region
              %s1276 = ssub.s32 256, 1
              loop: start=0, step=1, limit=1
              $region91: #{convlstm_cell.1} parent=89 // loop_pre_header
                _
              $region92: #{convlstm_cell.1} parent=89 // loop_header
                %s1278 = sphi 0, %s1282
                %p1279 = scmp.ge.s32.totalorder %s1278, 1
                %s1283 = sphi %s1257, %s1257
                %s1284 = sphi %s1268, %s1268
              $region93: #{convlstm_cell.1} parent=89 // loop_header_branch
                %1281 = sbr.rel (%p1279) target = $region97
              $region94: #{convlstm_cell.1} parent=89 // loop_body
                %v1285 = vld [vmem:[%s1283] sm:%s1276]
                %1286 = vst [vmem:[%s1284] sm:%s1276] %v1285
                %v1287 = vld [vmem:[%s1283 + $0x8] sm:%s1276]
                %1288 = vst [vmem:[%s1284 + $0x10] sm:%s1276] %v1287
                %v1289 = vld [vmem:[%s1283 + $0x10] sm:%s1276]
                %1290 = vst [vmem:[%s1284 + $0x20] sm:%s1276] %v1289
                %v1291 = vld [vmem:[%s1283 + $0x18] sm:%s1276]
                %1292 = vst [vmem:[%s1284 + $0x30] sm:%s1276] %v1291
              $region95: #{convlstm_cell.1} parent=89 // loop_footer
                %s1282 = sadd.s32 1, %s1278
              $region96: #{convlstm_cell.1} parent=89 // loop_footer_branch
                %1277 = sbr.rel target = $region92
              $region97: #{convlstm_cell.1} parent=89 // loop_exit
                _
            $region90: #{convlstm_cell.1} parent=81 // pred_fallthru
              _
          $region82: #{convlstm_cell.1} parent=77 // pred_fallthru
            _
          %1313 = vnop
        $region78: #{convlstm_cell.1} parent=69 // pred_fallthru
          _
        // Predicated region
        $region113: #{convlstm_cell.1} parent=69 // pred_check
          %p1314 = pneg %p177
        $region114: #{convlstm_cell.1} parent=69 // pred_check_branch
          %1316 = sbr.rel (%p1314) target = $region116
        $region115: #{convlstm_cell.1} parent=69 // pred_region
          %s1317 = smul.addr %s21, 8
          %s1318 = sadd.s32 %s22, %s1317
          %s1319 = smul.addr %s1318, 8
          %s1320 = scalar_lea.vmem %s5, %s1319
          // Predicated region
          $region117: #{convlstm_cell.1} parent=115 // pred_check
            _
          $region118: #{convlstm_cell.1} parent=115 // pred_check_branch
            %1322 = sbr.rel (0) target = $region120
          $region119: #{convlstm_cell.1} parent=115 // pred_region
            // Predicated region
            $region121: #{convlstm_cell.1} parent=119 // pred_check
              _
            $region122: #{convlstm_cell.1} parent=119 // pred_check_branch
              %1324 = sbr.rel (0) target = $region124
            $region123: #{convlstm_cell.1} parent=119 // pred_region
              // Predicated region
              $region136: #{convlstm_cell.1} parent=123 // pred_check
                _
              $region137: #{convlstm_cell.1} parent=123 // pred_check_branch
                %1346 = sbr.rel (0) target = $region139
              $region138: #{convlstm_cell.1} parent=123 // pred_region
                loop: start=0, step=1, limit=1
                $region140: #{convlstm_cell.1} parent=138 // loop_pre_header
                  _
                $region141: #{convlstm_cell.1} parent=138 // loop_header
                  %s1348 = sphi 0, %s1352
                  %p1349 = scmp.ge.s32.totalorder %s1348, 1
                  %s1353 = sphi %s1261, %s1261
                  %s1354 = sphi %s1320, %s1320
                $region142: #{convlstm_cell.1} parent=138 // loop_header_branch
                  %1351 = sbr.rel (%p1349) target = $region146
                $region143: #{convlstm_cell.1} parent=138 // loop_body
                  %v1355 = vld [vmem:[%s1353] sm:$0xff]
                  %1356 = vst [vmem:[%s1354] sm:$0xff] %v1355
                  %v1357 = vld [vmem:[%s1353 + $0x8] sm:$0xff]
                  %1358 = vst [vmem:[%s1354 + $0x10] sm:$0xff] %v1357
                  %v1359 = vld [vmem:[%s1353 + $0x10] sm:$0xff]
                  %1360 = vst [vmem:[%s1354 + $0x20] sm:$0xff] %v1359
                  %v1361 = vld [vmem:[%s1353 + $0x18] sm:$0xff]
                  %1362 = vst [vmem:[%s1354 + $0x30] sm:$0xff] %v1361
                $region144: #{convlstm_cell.1} parent=138 // loop_footer
                  %s1352 = sadd.s32 1, %s1348
                $region145: #{convlstm_cell.1} parent=138 // loop_footer_branch
                  %1347 = sbr.rel target = $region141
                $region146: #{convlstm_cell.1} parent=138 // loop_exit
                  _
              $region139: #{convlstm_cell.1} parent=123 // pred_fallthru
                _
              // Predicated region
              $region147: #{convlstm_cell.1} parent=123 // pred_check
                _
              $region148: #{convlstm_cell.1} parent=123 // pred_check_branch
                %1364 = sbr.rel target = $region150
              $region149: #{convlstm_cell.1} parent=123 // pred_region
                _
              $region150: #{convlstm_cell.1} parent=123 // pred_fallthru
                _
            $region124: #{convlstm_cell.1} parent=119 // pred_fallthru
              _
            // Predicated region
            $region125: #{convlstm_cell.1} parent=119 // pred_check
              _
            $region126: #{convlstm_cell.1} parent=119 // pred_check_branch
              %1326 = sbr.rel target = $region128
            $region127: #{convlstm_cell.1} parent=119 // pred_region
              %s1328 = ssub.s32 256, 1
              loop: start=0, step=1, limit=1
              $region129: #{convlstm_cell.1} parent=127 // loop_pre_header
                _
              $region130: #{convlstm_cell.1} parent=127 // loop_header
                %s1330 = sphi 0, %s1334
                %p1331 = scmp.ge.s32.totalorder %s1330, 1
                %s1335 = sphi %s1261, %s1261
                %s1336 = sphi %s1320, %s1320
              $region131: #{convlstm_cell.1} parent=127 // loop_header_branch
                %1333 = sbr.rel (%p1331) target = $region135
              $region132: #{convlstm_cell.1} parent=127 // loop_body
                %v1337 = vld [vmem:[%s1335] sm:%s1328]
                %1338 = vst [vmem:[%s1336] sm:%s1328] %v1337
                %v1339 = vld [vmem:[%s1335 + $0x8] sm:%s1328]
                %1340 = vst [vmem:[%s1336 + $0x10] sm:%s1328] %v1339
                %v1341 = vld [vmem:[%s1335 + $0x10] sm:%s1328]
                %1342 = vst [vmem:[%s1336 + $0x20] sm:%s1328] %v1341
                %v1343 = vld [vmem:[%s1335 + $0x18] sm:%s1328]
                %1344 = vst [vmem:[%s1336 + $0x30] sm:%s1328] %v1343
              $region133: #{convlstm_cell.1} parent=127 // loop_footer
                %s1334 = sadd.s32 1, %s1330
              $region134: #{convlstm_cell.1} parent=127 // loop_footer_branch
                %1329 = sbr.rel target = $region130
              $region135: #{convlstm_cell.1} parent=127 // loop_exit
                _
            $region128: #{convlstm_cell.1} parent=119 // pred_fallthru
              _
          $region120: #{convlstm_cell.1} parent=115 // pred_fallthru
            _
          %1365 = vnop
        $region116: #{convlstm_cell.1} parent=69 // pred_fallthru
          _
      $region70: #{convlstm_cell.1} parent=5 // pred_fallthru
        _
      %p1366 = scmp.le.s32.totalorder 2, %s12
      // Predicated region
      $region151: #{convlstm_cell.1} parent=5 // pred_check
        %p1367 = pneg %p1366
      $region152: #{convlstm_cell.1} parent=5 // pred_check_branch
        %1369 = sbr.rel (%p1367) target = $region154
      $region153: #{convlstm_cell.1} parent=5 // pred_region
        %s1370 = ssub.s32 %s12, 2
        // Predicated region
        $region155: #{convlstm_cell.1} parent=153 // pred_check
          %p1371 = pneg %p155
        $region156: #{convlstm_cell.1} parent=153 // pred_check_branch
          %1373 = sbr.rel (%p1371) target = $region158
        $region157: #{convlstm_cell.1} parent=153 // pred_region
          %s1374 = sand.u32 %s140, 1
          %s1375 = sand.u32 %s140, 1
          %s1376 = smul.addr %s1375, 32
          %s1377 = scalar_lea.vmem [#allocation3], %s1376
        $region158: #{convlstm_cell.1} parent=153 // pred_fallthru
          _
        // Predicated region
        $region159: #{convlstm_cell.1} parent=153 // pred_check
          %p1378 = pneg %p183
        $region160: #{convlstm_cell.1} parent=153 // pred_check_branch
          %1380 = sbr.rel (%p1378) target = $region162
        $region161: #{convlstm_cell.1} parent=153 // pred_region
          %s1381 = sand.u32 %s168, 1
          %s1382 = sand.u32 %s168, 1
          %s1383 = smul.addr %s1382, 32
          %s1384 = scalar_lea.vmem [#allocation4], %s1383
        $region162: #{convlstm_cell.1} parent=153 // pred_fallthru
          _
      $region154: #{convlstm_cell.1} parent=5 // pred_fallthru
        _
    $region6: #{convlstm_cell.1} parent=1 // loop_footer
      %s16 = sadd.s32 1, %s12
    $region7: #{convlstm_cell.1} parent=1 // loop_footer_branch
      %11 = sbr.rel target = $region3
    $region8: #{convlstm_cell.1} parent=1 // loop_exit
      _

</llo_original>
